<compile_context>
chip_gen: v7x
topology: tpu7x:2x2x1
jax: 0.10.0
libtpu: 0.0.40
codegen_flags: <defaults>
</compile_context>

<pallas_src>
import math
import functools

import jax
import jax.numpy as jnp
from jax.experimental import pallas as pl
from jax.experimental.pallas import tpu as pltpu


def _mha_kernel(k_ref, q_ref, v_ref,
                wk_ref, wq_ref, bq_ref, wv_ref, wp_ref, bp_ref,
                o_ref, *, n_heads, head_size, n_keys, n_q, batch_block, scale):
    """Fused multihead attention for one block of `batch_block` batch rows.

    k_ref: (Bb*n_keys, kq) bf16   q_ref: (Bb*n_q, kq) bf16   v_ref: (Bb*n_keys, vs) bf16
    wk/wq: (kq, kq) bf16 [in,out]  bq: (1, kq) f32
    wv:    (vs, vs) bf16 [in,out]  wp: (vs, out) bf16 [in,out]  bp: (1, out) f32
    o_ref: (Bb*n_q, out) f32
    """
    bb = batch_block
    out_dim = o_ref.shape[-1]
    feat = n_heads * head_size

    # Load weights / biases once (pre-transposed [in, out]; no in-kernel .T).
    wk = wk_ref[...]
    wq = wq_ref[...]
    wv = wv_ref[...]
    wp = wp_ref[...]
    bq = bq_ref[...]
    bp = bp_ref[...]

    # Fat 2D projections over all Bb*seq rows; bf16 MXU, f32 accumulation.
    kp = jnp.dot(k_ref[...], wk, preferred_element_type=jnp.float32)
    # Fold the attention scale into Q right after the (biased) projection:
    # ((q@Wq + b) * s) . k == ((q@Wq + b) . k) * s, and qp is much smaller
    # than the (n_q, n_keys) logits tile.
    qp = (jnp.dot(q_ref[...], wq, preferred_element_type=jnp.float32) + bq) * scale
    vp = jnp.dot(v_ref[...], wv, preferred_element_type=jnp.float32)

    # bf16 operands for the MXU; leading-dim split reshape (layout preserving,
    # seq % 8 == 0) so the attention runs batched over the whole block.
    kp = kp.astype(jnp.bfloat16).reshape(bb, n_keys, feat)
    qp = qp.astype(jnp.bfloat16).reshape(bb, n_q, feat)
    vp = vp.astype(jnp.bfloat16).reshape(bb, n_keys, feat)

    acc = jnp.zeros((bb * n_q, out_dim), jnp.float32)
    for h in range(n_heads):
        c0 = h * head_size
        qh = qp[:, :, c0:c0 + head_size]        # (bb, n_q, hd)
        kh = kp[:, :, c0:c0 + head_size]        # (bb, n_keys, hd)
        vh = vp[:, :, c0:c0 + head_size]        # (bb, n_keys, hd)

        # Batched logits for the whole batch block (no materialized K^T).
        logits = jnp.einsum("bqd,bkd->bqk", qh, kh,
                            preferred_element_type=jnp.float32)   # (bb, n_q, n_keys)

        m = jnp.max(logits, axis=-1, keepdims=True)
        p = jnp.exp(logits - m)
        l = jnp.sum(p, axis=-1, keepdims=True)

        # P @ V with unnormalized probabilities; normalize the (smaller)
        # context with an approx reciprocal (EUP) instead of the probs.
        ctx = jnp.einsum("bqk,bkd->bqd", p.astype(jnp.bfloat16), vh,
                         preferred_element_type=jnp.float32)       # (bb, n_q, hd)
        ctx = ctx * pl.reciprocal(l, approx=True)

        # Fold the post-processing linear into the head loop (no lane-axis
        # concatenate of sub-128 head chunks).
        ctx2 = ctx.astype(jnp.bfloat16).reshape(bb * n_q, head_size)
        acc = acc + jnp.dot(ctx2, wp[c0:c0 + head_size, :],
                            preferred_element_type=jnp.float32)

    o_ref[...] = acc + bp


def multihead_attender(keys, queries, values, params, *, n_heads,
                       batch_block=None):
    """keys/queries/values: [B, seq, feat] f32; params as produced by init_params."""
    B, n_keys, kq = keys.shape
    _, n_q, _ = queries.shape
    vs = values.shape[-1]
    out_size = params["wp"].shape[0]

    # The torch module is only well-defined in this configuration.
    assert kq % n_heads == 0 and vs % n_heads == 0
    assert vs == kq, "MultiheadAttender is only consistent for value_size == kq_size"
    head_size = kq // n_heads
    assert head_size * n_heads == kq
    assert n_keys % 8 == 0 and n_q % 8 == 0, "sequence lengths must be multiples of 8"

    if batch_block is None:
        batch_block = min(B, 8)
    while B % batch_block != 0:
        batch_block -= 1
    bb = batch_block

    bf = jnp.bfloat16
    # Layout plumbing in the wrapper: flatten batch*seq, pre-transpose weights
    # to [in, out], cast MXU operands to bf16 (halves HBM DMA bytes).
    k2d = keys.reshape(B * n_keys, kq).astype(bf)
    q2d = queries.reshape(B * n_q, kq).astype(bf)
    v2d = values.reshape(B * n_keys, vs).astype(bf)
    wk_t = params["wk"].T.astype(bf)
    wq_t = params["wq"].T.astype(bf)
    wv_t = params["wv"].T.astype(bf)
    wp_t = params["wp"].T.astype(bf)
    bq = params["bq"].astype(jnp.float32)
    bp = params["bp"].astype(jnp.float32)

    kernel = functools.partial(
        _mha_kernel, n_heads=n_heads, head_size=head_size,
        n_keys=n_keys, n_q=n_q, batch_block=bb,
        scale=1.0 / math.sqrt(head_size))

    out2d = pl.pallas_call(
        kernel,
        out_shape=jax.ShapeDtypeStruct((B * n_q, out_size), jnp.float32),
        grid_spec=pltpu.PrefetchScalarGridSpec(
            num_scalar_prefetch=0,
            grid=(B // bb,),
            in_specs=[
                pl.BlockSpec((bb * n_keys, kq), lambda b: (b, 0)),   # keys
                pl.BlockSpec((bb * n_q, kq), lambda b: (b, 0)),      # queries
                pl.BlockSpec((bb * n_keys, vs), lambda b: (b, 0)),   # values
                pl.BlockSpec((kq, kq), lambda b: (0, 0)),            # wk^T
                pl.BlockSpec((kq, kq), lambda b: (0, 0)),            # wq^T
                pl.BlockSpec((1, kq), lambda b: (0, 0)),             # bq
                pl.BlockSpec((vs, vs), lambda b: (0, 0)),            # wv^T
                pl.BlockSpec((vs, out_size), lambda b: (0, 0)),      # wp^T
                pl.BlockSpec((1, out_size), lambda b: (0, 0)),       # bp
            ],
            out_specs=pl.BlockSpec((bb * n_q, out_size), lambda b: (b, 0)),
        ),
        compiler_params=pltpu.CompilerParams(
            dimension_semantics=("parallel",),
            vmem_limit_bytes=32 * 1024 * 1024),
    )(k2d, q2d, v2d, wk_t, wq_t, bq, wv_t, wp_t, bp)

    return out2d.reshape(B, n_q, out_size)


def reference(keys, queries, values, params, n_heads):
    """Pure-JAX f32 re-implementation of the PyTorch forward (module-exact)."""
    B, _, kq = keys.shape
    hd = kq // n_heads
    k = keys @ params["wk"].T
    q = queries @ params["wq"].T + params["bq"][0]
    v = values @ params["wv"].T

    def split(x):
        b, s, _ = x.shape
        return (x.reshape(b, s, n_heads, hd)
                 .transpose(2, 0, 1, 3)
                 .reshape(n_heads * b, s, hd))

    kh, qh, vh = split(k), split(q), split(v)
    logits = jnp.einsum("bkd,bqd->bqk", kh, qh) / math.sqrt(hd)
    attn = jax.nn.softmax(logits, axis=-1)
    ctx = jnp.einsum("bqk,bkd->bqd", attn, vh)
    ctx = (ctx.reshape(n_heads, B, -1, hd)
              .transpose(1, 2, 0, 3)
              .reshape(B, -1, n_heads * hd))
    return ctx @ params["wp"].T + params["bp"][0]


def reference_matched(keys, queries, values, params, n_heads):
    """Reference mirroring the kernel's bf16 casts / op order (tight check)."""
    bf = jnp.bfloat16
    B, _, kq = keys.shape
    n_q = queries.shape[1]
    hd = kq // n_heads
    scale = 1.0 / math.sqrt(hd)
    wk_t = params["wk"].T.astype(bf)
    wq_t = params["wq"].T.astype(bf)
    wv_t = params["wv"].T.astype(bf)
    wp_t = params["wp"].T.astype(bf)

    kp = jnp.einsum("bsc,co->bso", keys.astype(bf), wk_t,
                    preferred_element_type=jnp.float32)
    qp = (jnp.einsum("bsc,co->bso", queries.astype(bf), wq_t,
                     preferred_element_type=jnp.float32)
          + params["bq"][0]) * scale
    vp = jnp.einsum("bsc,co->bso", values.astype(bf), wv_t,
                    preferred_element_type=jnp.float32)
    kp, qp, vp = kp.astype(bf), qp.astype(bf), vp.astype(bf)

    def split(x):
        b, s, _ = x.shape
        return x.reshape(b, s, n_heads, hd).transpose(0, 2, 1, 3)  # (B,H,S,hd)

    kh, qh, vh = split(kp), split(qp), split(vp)
    logits = jnp.einsum("bhqd,bhkd->bhqk", qh, kh,
                        preferred_element_type=jnp.float32)
    m = jnp.max(logits, axis=-1, keepdims=True)
    p = jnp.exp(logits - m)
    l = jnp.sum(p, axis=-1, keepdims=True)
    # Normalize after the P@V matmul, like the kernel.
    ctx = jnp.einsum("bhqk,bhkd->bhqd", p.astype(bf), vh,
                     preferred_element_type=jnp.float32) / l
    ctx = ctx.astype(bf)
    ctx = ctx.transpose(0, 2, 1, 3).reshape(B, n_q, n_heads * hd)
    return (jnp.einsum("bsc,co->bso", ctx, wp_t,
                       preferred_element_type=jnp.float32) + params["bp"][0])


def init_params(key, kq_size, value_size, out_size, n_heads):
    kq_head = kq_size // n_heads
    v_head = kq_size // n_heads  # matches the module: kq_size // n_heads
    k1, k2, k3, k4, k5 = jax.random.split(key, 5)
    std_kq = math.sqrt(2.0 / (kq_size + kq_head))
    std_v = math.sqrt(2.0 / (value_size + v_head))
    params = {
        "wk": std_kq * jax.random.normal(k1, (kq_size, kq_size), jnp.float32),
        "wq": std_kq * jax.random.normal(k2, (kq_size, kq_size), jnp.float32),
        # query_transform bias (is_relative_pos=False -> bias=True)
        "bq": 0.01 * jax.random.normal(k3, (1, kq_size), jnp.float32),
        "wv": std_v * jax.random.normal(k4, (value_size, value_size),
                                        jnp.float32),
        # post_processor Linear(value_size, out_size)
        "wp": (1.0 / math.sqrt(value_size)) *
              jax.random.normal(k5, (out_size, value_size), jnp.float32),
        "bp": jnp.zeros((1, out_size), jnp.float32),
    }
    return params


if __name__ == "__main__":
    # Small, module-consistent shapes.
    B, n_keys, n_queries = 2, 8, 8
    kq_size = value_size = out_size = 32
    n_heads = 4

    root = jax.random.PRNGKey(0)
    kk, kq_, kv, kp_ = jax.random.split(root, 4)
    keys = jax.random.normal(kk, (B, n_keys, kq_size), jnp.float32)
    queries = jax.random.normal(kq_, (B, n_queries, kq_size), jnp.float32)
    values = jax.random.normal(kv, (B, n_keys, value_size), jnp.float32)
    params = init_params(kp_, kq_size, value_size, out_size, n_heads)

    out = multihead_attender(keys, queries, values, params, n_heads=n_heads)
    out = jax.block_until_ready(out)

    ref_bf16 = reference_matched(keys, queries, values, params, n_heads)
    ref_f32 = reference(keys, queries, values, params, n_heads)

    assert out.shape == (B, n_queries, out_size)
    err_matched = float(jnp.max(jnp.abs(out - ref_bf16)))
    err_f32 = float(jnp.max(jnp.abs(out - ref_f32)))
    # Tight check vs a bf16-matched reference (covers approx-reciprocal error),
    # loose sanity check vs the exact f32 module semantics (bf16 MXU operands).
    assert err_matched < 2e-2, f"mismatch vs bf16-matched reference: {err_matched}"
    assert err_f32 < 1.5e-1, f"mismatch vs f32 module reference: {err_f32}"

    print("KERNEL_OK")
</pallas_src>

<mosaic_0001>
module attributes {stable_mosaic.version = 11 : i64} {
  func.func @_mha_kernel(%arg0: i32, %arg1: memref<16x32xbf16, #tpu.memory_space<vmem>>, %arg2: memref<16x32xbf16, #tpu.memory_space<vmem>>, %arg3: memref<16x32xbf16, #tpu.memory_space<vmem>>, %arg4: memref<32x32xbf16, #tpu.memory_space<vmem>>, %arg5: memref<32x32xbf16, #tpu.memory_space<vmem>>, %arg6: memref<1x32xf32, #tpu.memory_space<vmem>>, %arg7: memref<32x32xbf16, #tpu.memory_space<vmem>>, %arg8: memref<32x32xbf16, #tpu.memory_space<vmem>>, %arg9: memref<1x32xf32, #tpu.memory_space<vmem>>, %arg10: memref<16x32xf32, #tpu.memory_space<vmem>>) attributes {dimension_semantics = [#tpu.dimension_semantics<parallel>], iteration_bounds = array<i64: 1>, scalar_prefetch = 0 : i64, scratch_operands = 0 : i64, tpu.core_type = #tpu.core_type<tc>, window_params = [{transform_indices = @transform_0, window_bounds = array<i64: 16, 32>}, {transform_indices = @transform_1, window_bounds = array<i64: 16, 32>}, {transform_indices = @transform_2, window_bounds = array<i64: 16, 32>}, {pipeline_mode = #tpu.pipeline_mode<synchronous>, transform_indices = @transform_3, window_bounds = array<i64: 32, 32>}, {pipeline_mode = #tpu.pipeline_mode<synchronous>, transform_indices = @transform_4, window_bounds = array<i64: 32, 32>}, {pipeline_mode = #tpu.pipeline_mode<synchronous>, transform_indices = @transform_5, window_bounds = array<i64: 1, 32>}, {pipeline_mode = #tpu.pipeline_mode<synchronous>, transform_indices = @transform_6, window_bounds = array<i64: 32, 32>}, {pipeline_mode = #tpu.pipeline_mode<synchronous>, transform_indices = @transform_7, window_bounds = array<i64: 32, 32>}, {pipeline_mode = #tpu.pipeline_mode<synchronous>, transform_indices = @transform_8, window_bounds = array<i64: 1, 32>}, {transform_indices = @transform_9, window_bounds = array<i64: 16, 32>}]} {
    %c0 = arith.constant 0 : index
    %c0_0 = arith.constant 0 : index
    %0 = vector.load %arg4[%c0, %c0_0] : memref<32x32xbf16, #tpu.memory_space<vmem>>, vector<32x32xbf16>
    %c0_1 = arith.constant 0 : index
    %c0_2 = arith.constant 0 : index
    %1 = vector.load %arg5[%c0_1, %c0_2] : memref<32x32xbf16, #tpu.memory_space<vmem>>, vector<32x32xbf16>
    %c0_3 = arith.constant 0 : index
    %c0_4 = arith.constant 0 : index
    %2 = vector.load %arg7[%c0_3, %c0_4] : memref<32x32xbf16, #tpu.memory_space<vmem>>, vector<32x32xbf16>
    %c0_5 = arith.constant 0 : index
    %c0_6 = arith.constant 0 : index
    %3 = vector.load %arg8[%c0_5, %c0_6] : memref<32x32xbf16, #tpu.memory_space<vmem>>, vector<32x32xbf16>
    %c0_7 = arith.constant 0 : index
    %c0_8 = arith.constant 0 : index
    %4 = vector.load %arg6[%c0_7, %c0_8] : memref<1x32xf32, #tpu.memory_space<vmem>>, vector<1x32xf32>
    %c0_9 = arith.constant 0 : index
    %c0_10 = arith.constant 0 : index
    %5 = vector.load %arg9[%c0_9, %c0_10] : memref<1x32xf32, #tpu.memory_space<vmem>>, vector<1x32xf32>
    %c0_11 = arith.constant 0 : index
    %c0_12 = arith.constant 0 : index
    %6 = vector.load %arg1[%c0_11, %c0_12] : memref<16x32xbf16, #tpu.memory_space<vmem>>, vector<16x32xbf16>
    %cst = arith.constant dense<0.000000e+00> : vector<16x32xf32>
    %7 = tpu.matmul %6, %0, %cst {dimension_numbers = #tpu.dot_dimension_numbers<[1], [0], [0], [1], [0, 0, 1, 1], [], []>} : vector<16x32xbf16>, vector<32x32xbf16>, vector<16x32xf32> -> vector<16x32xf32>
    %c0_13 = arith.constant 0 : index
    %c0_14 = arith.constant 0 : index
    %8 = vector.load %arg2[%c0_13, %c0_14] : memref<16x32xbf16, #tpu.memory_space<vmem>>, vector<16x32xbf16>
    %cst_15 = arith.constant dense<0.000000e+00> : vector<16x32xf32>
    %9 = tpu.matmul %8, %1, %cst_15 {dimension_numbers = #tpu.dot_dimension_numbers<[1], [0], [0], [1], [0, 0, 1, 1], [], []>} : vector<16x32xbf16>, vector<32x32xbf16>, vector<16x32xf32> -> vector<16x32xf32>
    %10 = vector.broadcast %4 : vector<1x32xf32> to vector<16x32xf32>
    %11 = arith.addf %9, %10 : vector<16x32xf32>
    %cst_16 = arith.constant 0.353553385 : f32
    %12 = vector.broadcast %cst_16 : f32 to vector<16x32xf32>
    %13 = arith.mulf %11, %12 : vector<16x32xf32>
    %c0_17 = arith.constant 0 : index
    %c0_18 = arith.constant 0 : index
    %14 = vector.load %arg3[%c0_17, %c0_18] : memref<16x32xbf16, #tpu.memory_space<vmem>>, vector<16x32xbf16>
    %cst_19 = arith.constant dense<0.000000e+00> : vector<16x32xf32>
    %15 = tpu.matmul %14, %2, %cst_19 {dimension_numbers = #tpu.dot_dimension_numbers<[1], [0], [0], [1], [0, 0, 1, 1], [], []>} : vector<16x32xbf16>, vector<32x32xbf16>, vector<16x32xf32> -> vector<16x32xf32>
    %16 = arith.truncf %7 : vector<16x32xf32> to vector<16x32xbf16>
    %17 = vector.shape_cast %16 : vector<16x32xbf16> to vector<2x8x32xbf16>
    %18 = arith.truncf %13 : vector<16x32xf32> to vector<16x32xbf16>
    %19 = vector.shape_cast %18 : vector<16x32xbf16> to vector<2x8x32xbf16>
    %20 = arith.truncf %15 : vector<16x32xf32> to vector<16x32xbf16>
    %21 = vector.shape_cast %20 : vector<16x32xbf16> to vector<2x8x32xbf16>
    %cst_20 = arith.constant 0.000000e+00 : f32
    %22 = vector.broadcast %cst_20 : f32 to vector<16x32xf32>
    %23 = vector.extract_strided_slice %19 {offsets = [0, 0, 0], sizes = [2, 8, 8], strides = [1, 1, 1]} : vector<2x8x32xbf16> to vector<2x8x8xbf16>
    %24 = vector.extract_strided_slice %17 {offsets = [0, 0, 0], sizes = [2, 8, 8], strides = [1, 1, 1]} : vector<2x8x32xbf16> to vector<2x8x8xbf16>
    %25 = vector.extract_strided_slice %21 {offsets = [0, 0, 0], sizes = [2, 8, 8], strides = [1, 1, 1]} : vector<2x8x32xbf16> to vector<2x8x8xbf16>
    "tpu.trace_start"() <{level = 10 : i32, message = "bqd,bkd->bqk"}> : () -> ()
    %cst_21 = arith.constant dense<0.000000e+00> : vector<2x8x8xf32>
    %26 = tpu.matmul %23, %24, %cst_21 {dimension_numbers = #tpu.dot_dimension_numbers<[2], [2], [1], [1], [0, 0, 0, 1, 1, 1], [0], [0]>} : vector<2x8x8xbf16>, vector<2x8x8xbf16>, vector<2x8x8xf32> -> vector<2x8x8xf32>
    "tpu.trace_stop"() : () -> ()
    %cst_22 = arith.constant dense<0xFF800000> : vector<2x8xf32>
    %27 = vector.multi_reduction <maximumf>, %26, %cst_22 [2] : vector<2x8x8xf32> to vector<2x8xf32>
    %28 = vector.shape_cast %27 : vector<2x8xf32> to vector<2x8x1xf32>
    %29 = vector.broadcast %28 : vector<2x8x1xf32> to vector<2x8x8xf32>
    %30 = arith.subf %26, %29 : vector<2x8x8xf32>
    %31 = math.exp %30 : vector<2x8x8xf32>
    %cst_23 = arith.constant dense<0.000000e+00> : vector<2x8xf32>
    %32 = vector.multi_reduction <add>, %31, %cst_23 [2] : vector<2x8x8xf32> to vector<2x8xf32>
    %33 = vector.shape_cast %32 : vector<2x8xf32> to vector<2x8x1xf32>
    %34 = arith.truncf %31 : vector<2x8x8xf32> to vector<2x8x8xbf16>
    "tpu.trace_start"() <{level = 10 : i32, message = "bqk,bkd->bqd"}> : () -> ()
    %cst_24 = arith.constant dense<0.000000e+00> : vector<2x8x8xf32>
    %35 = tpu.matmul %34, %25, %cst_24 {dimension_numbers = #tpu.dot_dimension_numbers<[2], [1], [1], [2], [0, 0, 0, 1, 1, 2], [0], [0]>} : vector<2x8x8xbf16>, vector<2x8x8xbf16>, vector<2x8x8xf32> -> vector<2x8x8xf32>
    "tpu.trace_stop"() : () -> ()
    %36 = tpu.reciprocal %33 {approx = true} : vector<2x8x1xf32> -> vector<2x8x1xf32>
    %37 = vector.broadcast %36 : vector<2x8x1xf32> to vector<2x8x8xf32>
    %38 = arith.mulf %35, %37 : vector<2x8x8xf32>
    %39 = arith.truncf %38 : vector<2x8x8xf32> to vector<2x8x8xbf16>
    %40 = vector.shape_cast %39 : vector<2x8x8xbf16> to vector<16x8xbf16>
    %41 = vector.extract_strided_slice %3 {offsets = [0, 0], sizes = [8, 32], strides = [1, 1]} : vector<32x32xbf16> to vector<8x32xbf16>
    %cst_25 = arith.constant dense<0.000000e+00> : vector<16x32xf32>
    %42 = tpu.matmul %40, %41, %cst_25 {dimension_numbers = #tpu.dot_dimension_numbers<[1], [0], [0], [1], [0, 0, 1, 1], [], []>} : vector<16x8xbf16>, vector<8x32xbf16>, vector<16x32xf32> -> vector<16x32xf32>
    %43 = arith.addf %22, %42 : vector<16x32xf32>
    %44 = vector.extract_strided_slice %19 {offsets = [0, 0, 8], sizes = [2, 8, 8], strides = [1, 1, 1]} : vector<2x8x32xbf16> to vector<2x8x8xbf16>
    %45 = vector.extract_strided_slice %17 {offsets = [0, 0, 8], sizes = [2, 8, 8], strides = [1, 1, 1]} : vector<2x8x32xbf16> to vector<2x8x8xbf16>
    %46 = vector.extract_strided_slice %21 {offsets = [0, 0, 8], sizes = [2, 8, 8], strides = [1, 1, 1]} : vector<2x8x32xbf16> to vector<2x8x8xbf16>
    "tpu.trace_start"() <{level = 10 : i32, message = "bqd,bkd->bqk"}> : () -> ()
    %cst_26 = arith.constant dense<0.000000e+00> : vector<2x8x8xf32>
    %47 = tpu.matmul %44, %45, %cst_26 {dimension_numbers = #tpu.dot_dimension_numbers<[2], [2], [1], [1], [0, 0, 0, 1, 1, 1], [0], [0]>} : vector<2x8x8xbf16>, vector<2x8x8xbf16>, vector<2x8x8xf32> -> vector<2x8x8xf32>
    "tpu.trace_stop"() : () -> ()
    %cst_27 = arith.constant dense<0xFF800000> : vector<2x8xf32>
    %48 = vector.multi_reduction <maximumf>, %47, %cst_27 [2] : vector<2x8x8xf32> to vector<2x8xf32>
    %49 = vector.shape_cast %48 : vector<2x8xf32> to vector<2x8x1xf32>
    %50 = vector.broadcast %49 : vector<2x8x1xf32> to vector<2x8x8xf32>
    %51 = arith.subf %47, %50 : vector<2x8x8xf32>
    %52 = math.exp %51 : vector<2x8x8xf32>
    %cst_28 = arith.constant dense<0.000000e+00> : vector<2x8xf32>
    %53 = vector.multi_reduction <add>, %52, %cst_28 [2] : vector<2x8x8xf32> to vector<2x8xf32>
    %54 = vector.shape_cast %53 : vector<2x8xf32> to vector<2x8x1xf32>
    %55 = arith.truncf %52 : vector<2x8x8xf32> to vector<2x8x8xbf16>
    "tpu.trace_start"() <{level = 10 : i32, message = "bqk,bkd->bqd"}> : () -> ()
    %cst_29 = arith.constant dense<0.000000e+00> : vector<2x8x8xf32>
    %56 = tpu.matmul %55, %46, %cst_29 {dimension_numbers = #tpu.dot_dimension_numbers<[2], [1], [1], [2], [0, 0, 0, 1, 1, 2], [0], [0]>} : vector<2x8x8xbf16>, vector<2x8x8xbf16>, vector<2x8x8xf32> -> vector<2x8x8xf32>
    "tpu.trace_stop"() : () -> ()
    %57 = tpu.reciprocal %54 {approx = true} : vector<2x8x1xf32> -> vector<2x8x1xf32>
    %58 = vector.broadcast %57 : vector<2x8x1xf32> to vector<2x8x8xf32>
    %59 = arith.mulf %56, %58 : vector<2x8x8xf32>
    %60 = arith.truncf %59 : vector<2x8x8xf32> to vector<2x8x8xbf16>
    %61 = vector.shape_cast %60 : vector<2x8x8xbf16> to vector<16x8xbf16>
    %62 = vector.extract_strided_slice %3 {offsets = [8, 0], sizes = [8, 32], strides = [1, 1]} : vector<32x32xbf16> to vector<8x32xbf16>
    %cst_30 = arith.constant dense<0.000000e+00> : vector<16x32xf32>
    %63 = tpu.matmul %61, %62, %cst_30 {dimension_numbers = #tpu.dot_dimension_numbers<[1], [0], [0], [1], [0, 0, 1, 1], [], []>} : vector<16x8xbf16>, vector<8x32xbf16>, vector<16x32xf32> -> vector<16x32xf32>
    %64 = arith.addf %43, %63 : vector<16x32xf32>
    %65 = vector.extract_strided_slice %19 {offsets = [0, 0, 16], sizes = [2, 8, 8], strides = [1, 1, 1]} : vector<2x8x32xbf16> to vector<2x8x8xbf16>
    %66 = vector.extract_strided_slice %17 {offsets = [0, 0, 16], sizes = [2, 8, 8], strides = [1, 1, 1]} : vector<2x8x32xbf16> to vector<2x8x8xbf16>
    %67 = vector.extract_strided_slice %21 {offsets = [0, 0, 16], sizes = [2, 8, 8], strides = [1, 1, 1]} : vector<2x8x32xbf16> to vector<2x8x8xbf16>
    "tpu.trace_start"() <{level = 10 : i32, message = "bqd,bkd->bqk"}> : () -> ()
    %cst_31 = arith.constant dense<0.000000e+00> : vector<2x8x8xf32>
    %68 = tpu.matmul %65, %66, %cst_31 {dimension_numbers = #tpu.dot_dimension_numbers<[2], [2], [1], [1], [0, 0, 0, 1, 1, 1], [0], [0]>} : vector<2x8x8xbf16>, vector<2x8x8xbf16>, vector<2x8x8xf32> -> vector<2x8x8xf32>
    "tpu.trace_stop"() : () -> ()
    %cst_32 = arith.constant dense<0xFF800000> : vector<2x8xf32>
    %69 = vector.multi_reduction <maximumf>, %68, %cst_32 [2] : vector<2x8x8xf32> to vector<2x8xf32>
    %70 = vector.shape_cast %69 : vector<2x8xf32> to vector<2x8x1xf32>
    %71 = vector.broadcast %70 : vector<2x8x1xf32> to vector<2x8x8xf32>
    %72 = arith.subf %68, %71 : vector<2x8x8xf32>
    %73 = math.exp %72 : vector<2x8x8xf32>
    %cst_33 = arith.constant dense<0.000000e+00> : vector<2x8xf32>
    %74 = vector.multi_reduction <add>, %73, %cst_33 [2] : vector<2x8x8xf32> to vector<2x8xf32>
    %75 = vector.shape_cast %74 : vector<2x8xf32> to vector<2x8x1xf32>
    %76 = arith.truncf %73 : vector<2x8x8xf32> to vector<2x8x8xbf16>
    "tpu.trace_start"() <{level = 10 : i32, message = "bqk,bkd->bqd"}> : () -> ()
    %cst_34 = arith.constant dense<0.000000e+00> : vector<2x8x8xf32>
    %77 = tpu.matmul %76, %67, %cst_34 {dimension_numbers = #tpu.dot_dimension_numbers<[2], [1], [1], [2], [0, 0, 0, 1, 1, 2], [0], [0]>} : vector<2x8x8xbf16>, vector<2x8x8xbf16>, vector<2x8x8xf32> -> vector<2x8x8xf32>
    "tpu.trace_stop"() : () -> ()
    %78 = tpu.reciprocal %75 {approx = true} : vector<2x8x1xf32> -> vector<2x8x1xf32>
    %79 = vector.broadcast %78 : vector<2x8x1xf32> to vector<2x8x8xf32>
    %80 = arith.mulf %77, %79 : vector<2x8x8xf32>
    %81 = arith.truncf %80 : vector<2x8x8xf32> to vector<2x8x8xbf16>
    %82 = vector.shape_cast %81 : vector<2x8x8xbf16> to vector<16x8xbf16>
    %83 = vector.extract_strided_slice %3 {offsets = [16, 0], sizes = [8, 32], strides = [1, 1]} : vector<32x32xbf16> to vector<8x32xbf16>
    %cst_35 = arith.constant dense<0.000000e+00> : vector<16x32xf32>
    %84 = tpu.matmul %82, %83, %cst_35 {dimension_numbers = #tpu.dot_dimension_numbers<[1], [0], [0], [1], [0, 0, 1, 1], [], []>} : vector<16x8xbf16>, vector<8x32xbf16>, vector<16x32xf32> -> vector<16x32xf32>
    %85 = arith.addf %64, %84 : vector<16x32xf32>
    %86 = vector.extract_strided_slice %19 {offsets = [0, 0, 24], sizes = [2, 8, 8], strides = [1, 1, 1]} : vector<2x8x32xbf16> to vector<2x8x8xbf16>
    %87 = vector.extract_strided_slice %17 {offsets = [0, 0, 24], sizes = [2, 8, 8], strides = [1, 1, 1]} : vector<2x8x32xbf16> to vector<2x8x8xbf16>
    %88 = vector.extract_strided_slice %21 {offsets = [0, 0, 24], sizes = [2, 8, 8], strides = [1, 1, 1]} : vector<2x8x32xbf16> to vector<2x8x8xbf16>
    "tpu.trace_start"() <{level = 10 : i32, message = "bqd,bkd->bqk"}> : () -> ()
    %cst_36 = arith.constant dense<0.000000e+00> : vector<2x8x8xf32>
    %89 = tpu.matmul %86, %87, %cst_36 {dimension_numbers = #tpu.dot_dimension_numbers<[2], [2], [1], [1], [0, 0, 0, 1, 1, 1], [0], [0]>} : vector<2x8x8xbf16>, vector<2x8x8xbf16>, vector<2x8x8xf32> -> vector<2x8x8xf32>
    "tpu.trace_stop"() : () -> ()
    %cst_37 = arith.constant dense<0xFF800000> : vector<2x8xf32>
    %90 = vector.multi_reduction <maximumf>, %89, %cst_37 [2] : vector<2x8x8xf32> to vector<2x8xf32>
    %91 = vector.shape_cast %90 : vector<2x8xf32> to vector<2x8x1xf32>
    %92 = vector.broadcast %91 : vector<2x8x1xf32> to vector<2x8x8xf32>
    %93 = arith.subf %89, %92 : vector<2x8x8xf32>
    %94 = math.exp %93 : vector<2x8x8xf32>
    %cst_38 = arith.constant dense<0.000000e+00> : vector<2x8xf32>
    %95 = vector.multi_reduction <add>, %94, %cst_38 [2] : vector<2x8x8xf32> to vector<2x8xf32>
    %96 = vector.shape_cast %95 : vector<2x8xf32> to vector<2x8x1xf32>
    %97 = arith.truncf %94 : vector<2x8x8xf32> to vector<2x8x8xbf16>
    "tpu.trace_start"() <{level = 10 : i32, message = "bqk,bkd->bqd"}> : () -> ()
    %cst_39 = arith.constant dense<0.000000e+00> : vector<2x8x8xf32>
    %98 = tpu.matmul %97, %88, %cst_39 {dimension_numbers = #tpu.dot_dimension_numbers<[2], [1], [1], [2], [0, 0, 0, 1, 1, 2], [0], [0]>} : vector<2x8x8xbf16>, vector<2x8x8xbf16>, vector<2x8x8xf32> -> vector<2x8x8xf32>
    "tpu.trace_stop"() : () -> ()
    %99 = tpu.reciprocal %96 {approx = true} : vector<2x8x1xf32> -> vector<2x8x1xf32>
    %100 = vector.broadcast %99 : vector<2x8x1xf32> to vector<2x8x8xf32>
    %101 = arith.mulf %98, %100 : vector<2x8x8xf32>
    %102 = arith.truncf %101 : vector<2x8x8xf32> to vector<2x8x8xbf16>
    %103 = vector.shape_cast %102 : vector<2x8x8xbf16> to vector<16x8xbf16>
    %104 = vector.extract_strided_slice %3 {offsets = [24, 0], sizes = [8, 32], strides = [1, 1]} : vector<32x32xbf16> to vector<8x32xbf16>
    %cst_40 = arith.constant dense<0.000000e+00> : vector<16x32xf32>
    %105 = tpu.matmul %103, %104, %cst_40 {dimension_numbers = #tpu.dot_dimension_numbers<[1], [0], [0], [1], [0, 0, 1, 1], [], []>} : vector<16x8xbf16>, vector<8x32xbf16>, vector<16x32xf32> -> vector<16x32xf32>
    %106 = arith.addf %85, %105 : vector<16x32xf32>
    %107 = vector.broadcast %5 : vector<1x32xf32> to vector<16x32xf32>
    %108 = arith.addf %106, %107 : vector<16x32xf32>
    %c0_41 = arith.constant 0 : index
    %c0_42 = arith.constant 0 : index
    %109 = vector.load %arg10[%c0_41, %c0_42] : memref<16x32xf32, #tpu.memory_space<vmem>>, vector<16x32xf32>
    tpu.vector_store %arg10[%c0_41, %c0_42], %108 {strides = array<i32>} : memref<16x32xf32, #tpu.memory_space<vmem>>, vector<16x32xf32>,
    return
  }
  func.func @transform_0(%arg0: i32) -> (i32, i32) {
    %c0_i32 = arith.constant 0 : i32
    %c0_i32_0 = arith.constant 0 : i32
    return %arg0, %c0_i32 : i32, i32
  }
  func.func @transform_1(%arg0: i32) -> (i32, i32) {
    %c0_i32 = arith.constant 0 : i32
    %c0_i32_0 = arith.constant 0 : i32
    return %arg0, %c0_i32 : i32, i32
  }
  func.func @transform_2(%arg0: i32) -> (i32, i32) {
    %c0_i32 = arith.constant 0 : i32
    %c0_i32_0 = arith.constant 0 : i32
    return %arg0, %c0_i32 : i32, i32
  }
  func.func @transform_3(%arg0: i32) -> (i32, i32) {
    %c0_i32 = arith.constant 0 : i32
    %c0_i32_0 = arith.constant 0 : i32
    %c0_i32_1 = arith.constant 0 : i32
    return %c0_i32, %c0_i32_0 : i32, i32
  }
  func.func @transform_4(%arg0: i32) -> (i32, i32) {
    %c0_i32 = arith.constant 0 : i32
    %c0_i32_0 = arith.constant 0 : i32
    %c0_i32_1 = arith.constant 0 : i32
    return %c0_i32, %c0_i32_0 : i32, i32
  }
  func.func @transform_5(%arg0: i32) -> (i32, i32) {
    %c0_i32 = arith.constant 0 : i32
    %c0_i32_0 = arith.constant 0 : i32
    %c0_i32_1 = arith.constant 0 : i32
    return %c0_i32, %c0_i32_0 : i32, i32
  }
  func.func @transform_6(%arg0: i32) -> (i32, i32) {
    %c0_i32 = arith.constant 0 : i32
    %c0_i32_0 = arith.constant 0 : i32
    %c0_i32_1 = arith.constant 0 : i32
    return %c0_i32, %c0_i32_0 : i32, i32
  }
  func.func @transform_7(%arg0: i32) -> (i32, i32) {
    %c0_i32 = arith.constant 0 : i32
    %c0_i32_0 = arith.constant 0 : i32
    %c0_i32_1 = arith.constant 0 : i32
    return %c0_i32, %c0_i32_0 : i32, i32
  }
  func.func @transform_8(%arg0: i32) -> (i32, i32) {
    %c0_i32 = arith.constant 0 : i32
    %c0_i32_0 = arith.constant 0 : i32
    %c0_i32_1 = arith.constant 0 : i32
    return %c0_i32, %c0_i32_0 : i32, i32
  }
  func.func @transform_9(%arg0: i32) -> (i32, i32) {
    %c0_i32 = arith.constant 0 : i32
    %c0_i32_0 = arith.constant 0 : i32
    return %arg0, %c0_i32 : i32, i32
  }
}

</mosaic_0001>

<llo_original>
// kernel: tpu_custom_call.1
$region0: #{tpu_custom_call.1}
  #allocation0 [shape = 'u32[]', space=smem, size = 0x4, offset = 0x4, fixed_abs, tag = 'smem constant byte address 0x4 - core index']
  #allocation1 [shape = 'u32[144,128]{1,0:T(1,128)}', space=vmem, size = 0x12000, scoped, tag = 'internal scratch']
  %s0 = inlined_call_operand.hbm [shape: bf16[16,32], index: 0, kind: input, shape index: {}]
  %s1 = inlined_call_operand.hbm [shape: bf16[16,32], index: 1, kind: input, shape index: {}]
  %s2 = inlined_call_operand.hbm [shape: bf16[16,32], index: 2, kind: input, shape index: {}]
  %s3 = inlined_call_operand.hbm [shape: bf16[32,32], index: 3, kind: input, shape index: {}]
  %s4 = inlined_call_operand.hbm [shape: bf16[32,32], index: 4, kind: input, shape index: {}]
  %s5 = inlined_call_operand.vmem [shape: f32[1,32], index: 5, kind: input, shape index: {}]
  %s6 = inlined_call_operand.vmem [shape: bf16[32,32], index: 6, kind: input, shape index: {}]
  %s7 = inlined_call_operand.hbm [shape: bf16[32,32], index: 7, kind: input, shape index: {}]
  %s8 = inlined_call_operand.vmem [shape: f32[1,32], index: 8, kind: input, shape index: {}]
  %s9 = inlined_call_operand.hbm [shape: f32[16,32], index: 9, kind: output, shape index: {}]
  %s10 = sld [smem:[#allocation0]]
  $region70: #{tpu_custom_call.1} parent=0
    _
  %s12 = ssub.s32 1, %s10
  %s13 = scalar_select 0, %s12, %s10
  $region1: #{tpu_custom_call.1} parent=0
    #allocation2 [shape = 'u8[4096]{0}', space=vmem, size = 0x1000, scoped, tag = 'input window, operand 0, single buffered']
    #allocation3 [shape = 's32[1]{0}', space=sflag, size = 0x4, scoped, tag = 'scoped memory for tpu_custom_call.1']
    #allocation4 [shape = 's32[1]{0}', space=sflag, size = 0x4, scoped, tag = 'scoped memory for tpu_custom_call.1']
    #allocation5 [shape = 'u8[4096]{0}', space=vmem, size = 0x1000, scoped, tag = 'input window, operand 1, single buffered']
    #allocation6 [shape = 's32[1]{0}', space=sflag, size = 0x4, scoped, tag = 'scoped memory for tpu_custom_call.1']
    #allocation7 [shape = 'u8[4096]{0}', space=vmem, size = 0x1000, scoped, tag = 'input window, operand 2, single buffered']
    #allocation8 [shape = 'u8[8192]{0}', space=vmem, size = 0x2000, scoped, tag = 'input window, operand 3, single buffered']
    #allocation9 [shape = 's32[1]{0}', space=sflag, size = 0x4, scoped, tag = 'scoped memory for tpu_custom_call.1']
    #allocation10 [shape = 'u8[8192]{0}', space=vmem, size = 0x2000, scoped, tag = 'input window, operand 4, single buffered']
    #allocation11 [shape = 'u8[8192]{0}', space=vmem, size = 0x2000, scoped, tag = 'input window, operand 7, single buffered']
    #allocation12 [shape = 's32[1]{0}', space=sflag, size = 0x4, scoped, tag = 'scoped memory for tpu_custom_call.1']
    #allocation13 [shape = 'u8[8192]{0}', space=vmem, size = 0x2000, scoped, tag = 'output window, operand 0, single buffered']
    %14 = vsyncpa [#allocation3], 0
    %15 = vsyncpa [#allocation6], 0
    %16 = vsyncpa [#allocation9], 0
    %17 = vsyncpa [#allocation12], 0
    %18 = vsyncpa [#allocation4], 0
    // Predicated region
    $region2: #{tpu_custom_call.1} parent=1 // pred_check
      _
    $region3: #{tpu_custom_call.1} parent=1 // pred_check_branch
      %20 = sbr.rel (0) target = $region5
    $region4: #{tpu_custom_call.1} parent=1 // pred_region
      %s22 = ssub.s32 128, 128
      %23 = vsyncadd [#allocation3], %s22
      %s24 = sshll.u32 [#allocation2], 4
      %s25 = int_to_ptr.vmem [resolvable:$true] %s24
      %30 = dma.hbm_to_vmem [thread:$0]  %s0, 128, %s25, [#allocation3], 64, 64, 4
    $region5: #{tpu_custom_call.1} parent=1 // pred_fallthru
      _
    // Predicated region
    $region6: #{tpu_custom_call.1} parent=1 // pred_check
      _
    $region7: #{tpu_custom_call.1} parent=1 // pred_check_branch
      %32 = sbr.rel (0) target = $region9
    $region8: #{tpu_custom_call.1} parent=1 // pred_region
      %s34 = ssub.s32 128, 128
      %35 = vsyncadd [#allocation6], %s34
      %s36 = sshll.u32 [#allocation5], 4
      %s37 = int_to_ptr.vmem [resolvable:$true] %s36
      %42 = dma.hbm_to_vmem [thread:$0]  %s1, 128, %s37, [#allocation6], 64, 64, 4
    $region9: #{tpu_custom_call.1} parent=1 // pred_fallthru
      _
    // Predicated region
    $region10: #{tpu_custom_call.1} parent=1 // pred_check
      _
    $region11: #{tpu_custom_call.1} parent=1 // pred_check_branch
      %44 = sbr.rel (0) target = $region13
    $region12: #{tpu_custom_call.1} parent=1 // pred_region
      %s46 = ssub.s32 128, 128
      %47 = vsyncadd [#allocation6], %s46
      %s48 = sshll.u32 [#allocation7], 4
      %s49 = int_to_ptr.vmem [resolvable:$true] %s48
      %54 = dma.hbm_to_vmem [thread:$0]  %s2, 128, %s49, [#allocation6], 64, 64, 4
    $region13: #{tpu_custom_call.1} parent=1 // pred_fallthru
      _
    // Predicated region
    $region14: #{tpu_custom_call.1} parent=1 // pred_check
      _
    $region15: #{tpu_custom_call.1} parent=1 // pred_check_branch
      %56 = sbr.rel (0) target = $region17
    $region16: #{tpu_custom_call.1} parent=1 // pred_region
      %s58 = ssub.s32 256, 256
      %59 = vsyncadd [#allocation9], %s58
      %s60 = sshll.u32 [#allocation8], 4
      %s61 = int_to_ptr.vmem [resolvable:$true] %s60
      %66 = dma.hbm_to_vmem [thread:$0]  %s3, 256, %s61, [#allocation9], 64, 64, 4
    $region17: #{tpu_custom_call.1} parent=1 // pred_fallthru
      _
    // Predicated region
    $region18: #{tpu_custom_call.1} parent=1 // pred_check
      _
    $region19: #{tpu_custom_call.1} parent=1 // pred_check_branch
      %68 = sbr.rel (0) target = $region21
    $region20: #{tpu_custom_call.1} parent=1 // pred_region
      %s70 = ssub.s32 256, 256
      %71 = vsyncadd [#allocation9], %s70
      %s72 = sshll.u32 [#allocation10], 4
      %s73 = int_to_ptr.vmem [resolvable:$true] %s72
      %78 = dma.hbm_to_vmem [thread:$0]  %s4, 256, %s73, [#allocation9], 64, 64, 4
    $region21: #{tpu_custom_call.1} parent=1 // pred_fallthru
      _
    // Predicated region
    $region22: #{tpu_custom_call.1} parent=1 // pred_check
      _
    $region23: #{tpu_custom_call.1} parent=1 // pred_check_branch
      %80 = sbr.rel (0) target = $region25
    $region24: #{tpu_custom_call.1} parent=1 // pred_region
      _
    $region25: #{tpu_custom_call.1} parent=1 // pred_fallthru
      _
    // Predicated region
    $region26: #{tpu_custom_call.1} parent=1 // pred_check
      _
    $region27: #{tpu_custom_call.1} parent=1 // pred_check_branch
      %82 = sbr.rel (0) target = $region29
    $region28: #{tpu_custom_call.1} parent=1 // pred_region
      _
    $region29: #{tpu_custom_call.1} parent=1 // pred_fallthru
      _
    // Predicated region
    $region30: #{tpu_custom_call.1} parent=1 // pred_check
      _
    $region31: #{tpu_custom_call.1} parent=1 // pred_check_branch
      %84 = sbr.rel (0) target = $region33
    $region32: #{tpu_custom_call.1} parent=1 // pred_region
      %s86 = ssub.s32 256, 256
      %87 = vsyncadd [#allocation12], %s86
      %s88 = sshll.u32 [#allocation11], 4
      %s89 = int_to_ptr.vmem [resolvable:$true] %s88
      %94 = dma.hbm_to_vmem [thread:$0]  %s7, 256, %s89, [#allocation12], 64, 64, 4
    $region33: #{tpu_custom_call.1} parent=1 // pred_fallthru
      _
    // Predicated region
    $region34: #{tpu_custom_call.1} parent=1 // pred_check
      _
    $region35: #{tpu_custom_call.1} parent=1 // pred_check_branch
      %96 = sbr.rel (0) target = $region37
    $region36: #{tpu_custom_call.1} parent=1 // pred_region
      _
    $region37: #{tpu_custom_call.1} parent=1 // pred_fallthru
      _
    // Predicated region
    $region38: #{tpu_custom_call.1} parent=1 // pred_check
      _
    $region39: #{tpu_custom_call.1} parent=1 // pred_check_branch
      %98 = sbr.rel (0) target = $region41
    $region40: #{tpu_custom_call.1} parent=1 // pred_region
      %99 = dma.done [#allocation3], 128
    $region41: #{tpu_custom_call.1} parent=1 // pred_fallthru
      _
    // Predicated region
    $region42: #{tpu_custom_call.1} parent=1 // pred_check
      _
    $region43: #{tpu_custom_call.1} parent=1 // pred_check_branch
      %101 = sbr.rel (0) target = $region45
    $region44: #{tpu_custom_call.1} parent=1 // pred_region
      %102 = dma.done [#allocation6], 128
    $region45: #{tpu_custom_call.1} parent=1 // pred_fallthru
      _
    // Predicated region
    $region46: #{tpu_custom_call.1} parent=1 // pred_check
      _
    $region47: #{tpu_custom_call.1} parent=1 // pred_check_branch
      %104 = sbr.rel (0) target = $region49
    $region48: #{tpu_custom_call.1} parent=1 // pred_region
      %105 = dma.done [#allocation6], 128
    $region49: #{tpu_custom_call.1} parent=1 // pred_fallthru
      _
    // Predicated region
    $region50: #{tpu_custom_call.1} parent=1 // pred_check
      _
    $region51: #{tpu_custom_call.1} parent=1 // pred_check_branch
      %107 = sbr.rel (0) target = $region53
    $region52: #{tpu_custom_call.1} parent=1 // pred_region
      %108 = dma.done [#allocation9], 256
    $region53: #{tpu_custom_call.1} parent=1 // pred_fallthru
      _
    // Predicated region
    $region54: #{tpu_custom_call.1} parent=1 // pred_check
      _
    $region55: #{tpu_custom_call.1} parent=1 // pred_check_branch
      %110 = sbr.rel (0) target = $region57
    $region56: #{tpu_custom_call.1} parent=1 // pred_region
      %111 = dma.done [#allocation9], 256
    $region57: #{tpu_custom_call.1} parent=1 // pred_fallthru
      _
    // Predicated region
    $region58: #{tpu_custom_call.1} parent=1 // pred_check
      _
    $region59: #{tpu_custom_call.1} parent=1 // pred_check_branch
      %113 = sbr.rel (0) target = $region61
    $region60: #{tpu_custom_call.1} parent=1 // pred_region
      %114 = dma.done [#allocation12], 256
    $region61: #{tpu_custom_call.1} parent=1 // pred_fallthru
      _
    %v116 = vld [vmem:[#allocation8] sm:$0xf]
    %v117 = vld [vmem:[#allocation8 + $0x4] sm:$0xf]
    %v118 = vld [vmem:[#allocation8 + $0x8] sm:$0xf]
    %v119 = vld [vmem:[#allocation8 + $0xc] sm:$0xf]
    %v120 = vld [vmem:[#allocation10] sm:$0xf]
    %v121 = vld [vmem:[#allocation10 + $0x4] sm:$0xf]
    %v122 = vld [vmem:[#allocation10 + $0x8] sm:$0xf]
    %v123 = vld [vmem:[#allocation10 + $0xc] sm:$0xf]
    %v124 = vld [vmem:[%s6] sm:$0xf]
    %v125 = vld [vmem:[%s6 + $0x4] sm:$0xf]
    %v126 = vld [vmem:[%s6 + $0x8] sm:$0xf]
    %v127 = vld [vmem:[%s6 + $0xc] sm:$0xf]
    %v128 = vld [vmem:[#allocation11] sm:$0xf]
    %v129 = vld [vmem:[#allocation11 + $0x4] sm:$0xf]
    %v130 = vld [vmem:[#allocation11 + $0x8] sm:$0xf]
    %v131 = vld [vmem:[#allocation11 + $0xc] sm:$0xf]
    %v132 = vld [vmem:[%s5] sm:$0x1]
    %v133 = vld [vmem:[%s8] sm:$0x1]
    %v134 = vld [vmem:[#allocation2] sm:$0xf]
    %v135 = vld [vmem:[#allocation2 + $0x4] sm:$0xf]
    %v138 = vunpack.c.l.b16 %v134
    %v139 = vunpack.c.l.b16 %v135
    %v140 = vpack.c.b16 %v139, %v138
    %v145 = vunpack.c.l.b16 %v116
    %v146 = vunpack.c.l.b16 %v117
    %v147 = vunpack.c.l.b16 %v118
    %v148 = vunpack.c.l.b16 %v119
    %v149 = vpack.c.b16 %v146, %v145
    %v150 = vpack.c.b16 %v148, %v147
    %vm153 = vcmask 261120
    %v155 = vsel %vm153, %v140, 0
    %157 = vmatprep.subr.bf16.mxu0 0
    %158 = vmatpush1.bf16.msra.mxu0 %v149
    %159 = vmatprep.subr.bf16.mxu0 0
    %160 = vmatpush1.bf16.msra.mxu0 %v150
    %161 = vmatprep.subr.bf16.mxu0 0
    %162 = vmatpush1.bf16.msra.mxu0 0
    %163 = vmatprep.subr.bf16.mxu0 0
    %164 = vmatpush1.bf16.msra.mxu0 0
    %165 = vmatprep.subr.bf16.mxu0 0
    %166 = vmatpush1.bf16.msra.mxu0 0
    %167 = vmatprep.subr.bf16.mxu0 0
    %168 = vmatpush1.bf16.msra.mxu0 0
    %169 = vmatprep.subr.bf16.mxu0 0
    %170 = vmatpush1.bf16.msra.mxu0 0
    %171 = vmatprep.subr.bf16.mxu0 0
    %172 = vmatpush1.bf16.msra.mxu0 0
    %173 = vmatprep.subr.bf16.mxu0 0
    %174 = vmatpush1.bf16.msra.mxu0 0
    %175 = vmatprep.subr.bf16.mxu0 0
    %176 = vmatpush1.bf16.msra.mxu0 0
    %177 = vmatprep.subr.bf16.mxu0 0
    %178 = vmatpush1.bf16.msra.mxu0 0
    %179 = vmatprep.subr.bf16.mxu0 0
    %180 = vmatpush1.bf16.msra.mxu0 0
    %181 = vmatprep.subr.bf16.mxu0 0
    %182 = vmatpush1.bf16.msra.mxu0 0
    %183 = vmatprep.subr.bf16.mxu0 0
    %184 = vmatpush1.bf16.msra.mxu0 0
    %185 = vmatprep.subr.bf16.mxu0 0
    %186 = vmatpush1.bf16.msra.mxu0 0
    %187 = vmatprep.subr.bf16.mxu0 0
    %188 = vmatpush1.bf16.msra.mxu0 0
    %189 = vmatprep.mubr.bf16.mxu0 0
    %190 = vmatmul.mubr.bf16.gmra.mrb[0].mxu0 %v155
    %v191 = vpop.f32.mrb[0].mxu0
    %v192 = vadd.f32 0.0, %v191
    %v193 = vpop.f32.mrb[0].mxu0
    %v194 = vpop.f32.mrb[0].mxu0
    %v195 = vadd.f32 0.0, %v194
    %v196 = vpop.f32.mrb[0].mxu0
    %197 = vdwg.mxu0
    %v198 = vld [vmem:[#allocation5] sm:$0xf]
    %v199 = vld [vmem:[#allocation5 + $0x4] sm:$0xf]
    %v201 = vlaneseq
    %v202 = vshrl.u32 %v201, 7
    %v203 = vsub.s32 0, %v202
    %v204 = vrot.slane %v132, %v203
    %v208 = vunpack.c.l.b16 %v198
    %v209 = vunpack.c.l.b16 %v199
    %v210 = vpack.c.b16 %v209, %v208
    %v215 = vunpack.c.l.b16 %v120
    %v216 = vunpack.c.l.b16 %v121
    %v217 = vunpack.c.l.b16 %v122
    %v218 = vunpack.c.l.b16 %v123
    %v219 = vpack.c.b16 %v216, %v215
    %v220 = vpack.c.b16 %v218, %v217
    %v224 = vsel %vm153, %v210, 0
    %226 = vmatprep.subr.bf16.mxu0 0
    %227 = vmatpush1.bf16.msra.mxu0 %v219
    %228 = vmatprep.subr.bf16.mxu0 0
    %229 = vmatpush1.bf16.msra.mxu0 %v220
    %230 = vmatprep.subr.bf16.mxu0 0
    %231 = vmatpush1.bf16.msra.mxu0 0
    %232 = vmatprep.subr.bf16.mxu0 0
    %233 = vmatpush1.bf16.msra.mxu0 0
    %234 = vmatprep.subr.bf16.mxu0 0
    %235 = vmatpush1.bf16.msra.mxu0 0
    %236 = vmatprep.subr.bf16.mxu0 0
    %237 = vmatpush1.bf16.msra.mxu0 0
    %238 = vmatprep.subr.bf16.mxu0 0
    %239 = vmatpush1.bf16.msra.mxu0 0
    %240 = vmatprep.subr.bf16.mxu0 0
    %241 = vmatpush1.bf16.msra.mxu0 0
    %242 = vmatprep.subr.bf16.mxu0 0
    %243 = vmatpush1.bf16.msra.mxu0 0
    %244 = vmatprep.subr.bf16.mxu0 0
    %245 = vmatpush1.bf16.msra.mxu0 0
    %246 = vmatprep.subr.bf16.mxu0 0
    %247 = vmatpush1.bf16.msra.mxu0 0
    %248 = vmatprep.subr.bf16.mxu0 0
    %249 = vmatpush1.bf16.msra.mxu0 0
    %250 = vmatprep.subr.bf16.mxu0 0
    %251 = vmatpush1.bf16.msra.mxu0 0
    %252 = vmatprep.subr.bf16.mxu0 0
    %253 = vmatpush1.bf16.msra.mxu0 0
    %254 = vmatprep.subr.bf16.mxu0 0
    %255 = vmatpush1.bf16.msra.mxu0 0
    %256 = vmatprep.subr.bf16.mxu0 0
    %257 = vmatpush1.bf16.msra.mxu0 0
    %258 = vmatprep.mubr.bf16.mxu0 0
    %259 = vmatmul.mubr.bf16.gmra.mrb[0].mxu0 %v224
    %v260 = vpop.f32.mrb[0].mxu0
    %v261 = vadd.f32 %v204, %v260
    %v262 = vpop.f32.mrb[0].mxu0
    %v263 = vpop.f32.mrb[0].mxu0
    %v264 = vadd.f32 %v204, %v263
    %v265 = vpop.f32.mrb[0].mxu0
    %266 = vdwg.mxu0
    %v267 = vmul.f32 %v261, 0.35355338
    %v268 = vmul.f32 %v264, 0.35355338
    %v269 = vld [vmem:[#allocation7] sm:$0xf]
    %v270 = vld [vmem:[#allocation7 + $0x4] sm:$0xf]
    %v273 = vunpack.c.l.b16 %v269
    %v274 = vunpack.c.l.b16 %v270
    %v275 = vpack.c.b16 %v274, %v273
    %v280 = vunpack.c.l.b16 %v124
    %v281 = vunpack.c.l.b16 %v125
    %v282 = vunpack.c.l.b16 %v126
    %v283 = vunpack.c.l.b16 %v127
    %v284 = vpack.c.b16 %v281, %v280
    %v285 = vpack.c.b16 %v283, %v282
    %v289 = vsel %vm153, %v275, 0
    %291 = vmatprep.subr.bf16.mxu0 0
    %292 = vmatpush1.bf16.msra.mxu0 %v284
    %293 = vmatprep.subr.bf16.mxu0 0
    %294 = vmatpush1.bf16.msra.mxu0 %v285
    %295 = vmatprep.subr.bf16.mxu0 0
    %296 = vmatpush1.bf16.msra.mxu0 0
    %297 = vmatprep.subr.bf16.mxu0 0
    %298 = vmatpush1.bf16.msra.mxu0 0
    %299 = vmatprep.subr.bf16.mxu0 0
    %300 = vmatpush1.bf16.msra.mxu0 0
    %301 = vmatprep.subr.bf16.mxu0 0
    %302 = vmatpush1.bf16.msra.mxu0 0
    %303 = vmatprep.subr.bf16.mxu0 0
    %304 = vmatpush1.bf16.msra.mxu0 0
    %305 = vmatprep.subr.bf16.mxu0 0
    %306 = vmatpush1.bf16.msra.mxu0 0
    %307 = vmatprep.subr.bf16.mxu0 0
    %308 = vmatpush1.bf16.msra.mxu0 0
    %309 = vmatprep.subr.bf16.mxu0 0
    %310 = vmatpush1.bf16.msra.mxu0 0
    %311 = vmatprep.subr.bf16.mxu0 0
    %312 = vmatpush1.bf16.msra.mxu0 0
    %313 = vmatprep.subr.bf16.mxu0 0
    %314 = vmatpush1.bf16.msra.mxu0 0
    %315 = vmatprep.subr.bf16.mxu0 0
    %316 = vmatpush1.bf16.msra.mxu0 0
    %317 = vmatprep.subr.bf16.mxu0 0
    %318 = vmatpush1.bf16.msra.mxu0 0
    %319 = vmatprep.subr.bf16.mxu0 0
    %320 = vmatpush1.bf16.msra.mxu0 0
    %321 = vmatprep.subr.bf16.mxu0 0
    %322 = vmatpush1.bf16.msra.mxu0 0
    %323 = vmatprep.mubr.bf16.mxu0 0
    %324 = vmatmul.mubr.bf16.gmra.mrb[0].mxu0 %v289
    %v325 = vpop.f32.mrb[0].mxu0
    %v326 = vadd.f32 0.0, %v325
    %v327 = vpop.f32.mrb[0].mxu0
    %v328 = vpop.f32.mrb[0].mxu0
    %v329 = vadd.f32 0.0, %v328
    %v330 = vpop.f32.mrb[0].mxu0
    %331 = vdwg.mxu0
    %v332 = vpack.c.bf16 %v195, %v192
    %v334 = vunpack.c.l.b16 %v332
    %v335 = vunpack.c.h.b16 %v332
    %v336 = vpack.c.b16 %v334, %v334
    %v337 = vpack.c.b16 %v335, %v335
    %v338 = vpack.c.bf16 %v268, %v267
    %v340 = vunpack.c.l.b16 %v338
    %v341 = vunpack.c.h.b16 %v338
    %v342 = vpack.c.b16 %v340, %v340
    %v343 = vpack.c.b16 %v341, %v341
    %v344 = vpack.c.bf16 %v329, %v326
    %v346 = vunpack.c.l.b16 %v344
    %v347 = vunpack.c.h.b16 %v344
    %v348 = vpack.c.b16 %v346, %v346
    %v349 = vpack.c.b16 %v347, %v347
    %vm350 = vcmask 64512
    %v352 = vsel %vm350, %v342, 0
    %v355 = vsel %vm350, %v336, 0
    %357 = vmatprep.subr.bf16.mxu0 0
    %358 = vmatpush1.bf16.xpose.msra.mxu0 %v355
    %359 = vmatprep.subr.bf16.mxu0 0
    %360 = vmatpush1.bf16.xpose.msra.mxu0 0
    %361 = vmatprep.subr.bf16.mxu0 0
    %362 = vmatpush1.bf16.xpose.msra.mxu0 0
    %363 = vmatprep.subr.bf16.mxu0 0
    %364 = vmatpush1.bf16.xpose.msra.mxu0 0
    %365 = vmatprep.subr.bf16.mxu0 0
    %366 = vmatpush1.bf16.xpose.msra.mxu0 0
    %367 = vmatprep.subr.bf16.mxu0 0
    %368 = vmatpush1.bf16.xpose.msra.mxu0 0
    %369 = vmatprep.subr.bf16.mxu0 0
    %370 = vmatpush1.bf16.xpose.msra.mxu0 0
    %371 = vmatprep.subr.bf16.mxu0 0
    %372 = vmatpush1.bf16.xpose.msra.mxu0 0
    %373 = vmatprep.subr.bf16.mxu0 0
    %374 = vmatpush1.bf16.xpose.msra.mxu0 0
    %375 = vmatprep.subr.bf16.mxu0 0
    %376 = vmatpush1.bf16.xpose.msra.mxu0 0
    %377 = vmatprep.subr.bf16.mxu0 0
    %378 = vmatpush1.bf16.xpose.msra.mxu0 0
    %379 = vmatprep.subr.bf16.mxu0 0
    %380 = vmatpush1.bf16.xpose.msra.mxu0 0
    %381 = vmatprep.subr.bf16.mxu0 0
    %382 = vmatpush1.bf16.xpose.msra.mxu0 0
    %383 = vmatprep.subr.bf16.mxu0 0
    %384 = vmatpush1.bf16.xpose.msra.mxu0 0
    %385 = vmatprep.subr.bf16.mxu0 0
    %386 = vmatpush1.bf16.xpose.msra.mxu0 0
    %387 = vmatprep.subr.bf16.mxu0 0
    %388 = vmatpush1.bf16.xpose.msra.mxu0 0
    %389 = vmatprep.mubr.bf16.mxu0 0
    %390 = vmatmul.mubr.bf16.gmra.mrb[0].mxu0 %v352
    %v391 = vpop.f32.mrb[0].mxu0
    %v392 = vadd.f32 0.0, %v391
    %v393 = vpop.f32.mrb[0].mxu0
    %v394 = vpop.f32.mrb[0].mxu0
    %v395 = vpop.f32.mrb[0].mxu0
    %396 = vdwg.mxu0
    %v398 = vsel %vm350, %v343, 0
    %v401 = vsel %vm350, %v337, 0
    %403 = vmatprep.subr.bf16.mxu0 0
    %404 = vmatpush1.bf16.xpose.msra.mxu0 %v401
    %405 = vmatprep.subr.bf16.mxu0 0
    %406 = vmatpush1.bf16.xpose.msra.mxu0 0
    %407 = vmatprep.subr.bf16.mxu0 0
    %408 = vmatpush1.bf16.xpose.msra.mxu0 0
    %409 = vmatprep.subr.bf16.mxu0 0
    %410 = vmatpush1.bf16.xpose.msra.mxu0 0
    %411 = vmatprep.subr.bf16.mxu0 0
    %412 = vmatpush1.bf16.xpose.msra.mxu0 0
    %413 = vmatprep.subr.bf16.mxu0 0
    %414 = vmatpush1.bf16.xpose.msra.mxu0 0
    %415 = vmatprep.subr.bf16.mxu0 0
    %416 = vmatpush1.bf16.xpose.msra.mxu0 0
    %417 = vmatprep.subr.bf16.mxu0 0
    %418 = vmatpush1.bf16.xpose.msra.mxu0 0
    %419 = vmatprep.subr.bf16.mxu0 0
    %420 = vmatpush1.bf16.xpose.msra.mxu0 0
    %421 = vmatprep.subr.bf16.mxu0 0
    %422 = vmatpush1.bf16.xpose.msra.mxu0 0
    %423 = vmatprep.subr.bf16.mxu0 0
    %424 = vmatpush1.bf16.xpose.msra.mxu0 0
    %425 = vmatprep.subr.bf16.mxu0 0
    %426 = vmatpush1.bf16.xpose.msra.mxu0 0
    %427 = vmatprep.subr.bf16.mxu0 0
    %428 = vmatpush1.bf16.xpose.msra.mxu0 0
    %429 = vmatprep.subr.bf16.mxu0 0
    %430 = vmatpush1.bf16.xpose.msra.mxu0 0
    %431 = vmatprep.subr.bf16.mxu0 0
    %432 = vmatpush1.bf16.xpose.msra.mxu0 0
    %433 = vmatprep.subr.bf16.mxu0 0
    %434 = vmatpush1.bf16.xpose.msra.mxu0 0
    %435 = vmatprep.mubr.bf16.mxu0 0
    %436 = vmatmul.mubr.bf16.gmra.mrb[0].mxu0 %v398
    %v437 = vpop.f32.mrb[0].mxu0
    %v438 = vadd.f32 0.0, %v437
    %v439 = vpop.f32.mrb[0].mxu0
    %v440 = vpop.f32.mrb[0].mxu0
    %v441 = vpop.f32.mrb[0].mxu0
    %442 = vdwg.mxu0
    %v443 = vsel %vm350, %v392, -inf
    %444 = vmax.xlane.f32.xlu0 %v443
    %v445 = vpop.xlane.xlu0 %444
    %v446 = vsel %vm350, %v438, -inf
    %447 = vmax.xlane.f32.xlu0 %v446
    %v448 = vpop.xlane.xlu0 %447
    %v449 = vsub.f32 %v392, %v445
    %v450 = vsub.f32 %v438, %v448
    %v451 = vmul.f32 %v449, 1.442695
    %v452 = vpow.pop %v451
    %v453 = vmul.f32 %v450, 1.442695
    %v454 = vpow.pop %v453
    %v455 = vsel %vm350, %v452, 0.0
    %456 = vadd.xlane.f32.xlu0 %v455
    %v457 = vpop.xlane.xlu0 %456
    %v458 = vsel %vm350, %v454, 0.0
    %459 = vadd.xlane.f32.xlu0 %v458
    %v460 = vpop.xlane.xlu0 %459
    %v461 = vpack.c.bf16 %v452, %v452
    %v462 = vpack.c.bf16 %v454, %v454
    %v464 = vsel %vm350, %v461, 0
    %vm466 = vcmask 1043456
    %v468 = vsel %vm466, %v348, 0
    %470 = vmatprep.subr.bf16.mxu0 0
    %471 = vmatpush1.bf16.msra.mxu0 %v468
    %472 = vmatprep.subr.bf16.mxu0 0
    %473 = vmatpush1.bf16.msra.mxu0 0
    %474 = vmatprep.subr.bf16.mxu0 0
    %475 = vmatpush1.bf16.msra.mxu0 0
    %476 = vmatprep.subr.bf16.mxu0 0
    %477 = vmatpush1.bf16.msra.mxu0 0
    %478 = vmatprep.subr.bf16.mxu0 0
    %479 = vmatpush1.bf16.msra.mxu0 0
    %480 = vmatprep.subr.bf16.mxu0 0
    %481 = vmatpush1.bf16.msra.mxu0 0
    %482 = vmatprep.subr.bf16.mxu0 0
    %483 = vmatpush1.bf16.msra.mxu0 0
    %484 = vmatprep.subr.bf16.mxu0 0
    %485 = vmatpush1.bf16.msra.mxu0 0
    %486 = vmatprep.subr.bf16.mxu0 0
    %487 = vmatpush1.bf16.msra.mxu0 0
    %488 = vmatprep.subr.bf16.mxu0 0
    %489 = vmatpush1.bf16.msra.mxu0 0
    %490 = vmatprep.subr.bf16.mxu0 0
    %491 = vmatpush1.bf16.msra.mxu0 0
    %492 = vmatprep.subr.bf16.mxu0 0
    %493 = vmatpush1.bf16.msra.mxu0 0
    %494 = vmatprep.subr.bf16.mxu0 0
    %495 = vmatpush1.bf16.msra.mxu0 0
    %496 = vmatprep.subr.bf16.mxu0 0
    %497 = vmatpush1.bf16.msra.mxu0 0
    %498 = vmatprep.subr.bf16.mxu0 0
    %499 = vmatpush1.bf16.msra.mxu0 0
    %500 = vmatprep.subr.bf16.mxu0 0
    %501 = vmatpush1.bf16.msra.mxu0 0
    %502 = vmatprep.mubr.bf16.mxu0 0
    %503 = vmatmul.mubr.bf16.gmra.mrb[0].mxu0 %v464
    %v504 = vpop.f32.mrb[0].mxu0
    %v505 = vadd.f32 0.0, %v504
    %v506 = vpop.f32.mrb[0].mxu0
    %v507 = vpop.f32.mrb[0].mxu0
    %v508 = vpop.f32.mrb[0].mxu0
    %509 = vdwg.mxu0
    %v511 = vsel %vm350, %v462, 0
    %v514 = vsel %vm466, %v349, 0
    %516 = vmatprep.subr.bf16.mxu0 0
    %517 = vmatpush1.bf16.msra.mxu0 %v514
    %518 = vmatprep.subr.bf16.mxu0 0
    %519 = vmatpush1.bf16.msra.mxu0 0
    %520 = vmatprep.subr.bf16.mxu0 0
    %521 = vmatpush1.bf16.msra.mxu0 0
    %522 = vmatprep.subr.bf16.mxu0 0
    %523 = vmatpush1.bf16.msra.mxu0 0
    %524 = vmatprep.subr.bf16.mxu0 0
    %525 = vmatpush1.bf16.msra.mxu0 0
    %526 = vmatprep.subr.bf16.mxu0 0
    %527 = vmatpush1.bf16.msra.mxu0 0
    %528 = vmatprep.subr.bf16.mxu0 0
    %529 = vmatpush1.bf16.msra.mxu0 0
    %530 = vmatprep.subr.bf16.mxu0 0
    %531 = vmatpush1.bf16.msra.mxu0 0
    %532 = vmatprep.subr.bf16.mxu0 0
    %533 = vmatpush1.bf16.msra.mxu0 0
    %534 = vmatprep.subr.bf16.mxu0 0
    %535 = vmatpush1.bf16.msra.mxu0 0
    %536 = vmatprep.subr.bf16.mxu0 0
    %537 = vmatpush1.bf16.msra.mxu0 0
    %538 = vmatprep.subr.bf16.mxu0 0
    %539 = vmatpush1.bf16.msra.mxu0 0
    %540 = vmatprep.subr.bf16.mxu0 0
    %541 = vmatpush1.bf16.msra.mxu0 0
    %542 = vmatprep.subr.bf16.mxu0 0
    %543 = vmatpush1.bf16.msra.mxu0 0
    %544 = vmatprep.subr.bf16.mxu0 0
    %545 = vmatpush1.bf16.msra.mxu0 0
    %546 = vmatprep.subr.bf16.mxu0 0
    %547 = vmatpush1.bf16.msra.mxu0 0
    %548 = vmatprep.mubr.bf16.mxu0 0
    %549 = vmatmul.mubr.bf16.gmra.mrb[0].mxu0 %v511
    %v550 = vpop.f32.mrb[0].mxu0
    %v551 = vadd.f32 0.0, %v550
    %v552 = vpop.f32.mrb[0].mxu0
    %v553 = vpop.f32.mrb[0].mxu0
    %v554 = vpop.f32.mrb[0].mxu0
    %555 = vdwg.mxu0
    %v556 = vrcp.pop %v457
    %v557 = vrcp.pop %v460
    %v558 = vmul.f32 %v505, %v556
    %v559 = vmul.f32 %v551, %v557
    %v560 = vpack.c.bf16 %v558, %v558
    %v561 = vpack.c.bf16 %v559, %v559
    %562 = vrot.lane.b32.xlu0 %v342, 120
    %v563 = vpop.permute.xlu0 %562
    %564 = vrot.lane.b32.xlu0 %v336, 120
    %v565 = vpop.permute.xlu0 %564
    %v567 = vsel %vm350, %v563, 0
    %v570 = vsel %vm350, %v565, 0
    %572 = vmatprep.subr.bf16.mxu0 0
    %573 = vmatpush1.bf16.xpose.msra.mxu0 %v570
    %574 = vmatprep.subr.bf16.mxu0 0
    %575 = vmatpush1.bf16.xpose.msra.mxu0 0
    %576 = vmatprep.subr.bf16.mxu0 0
    %577 = vmatpush1.bf16.xpose.msra.mxu0 0
    %578 = vmatprep.subr.bf16.mxu0 0
    %579 = vmatpush1.bf16.xpose.msra.mxu0 0
    %580 = vmatprep.subr.bf16.mxu0 0
    %581 = vmatpush1.bf16.xpose.msra.mxu0 0
    %582 = vmatprep.subr.bf16.mxu0 0
    %583 = vmatpush1.bf16.xpose.msra.mxu0 0
    %584 = vmatprep.subr.bf16.mxu0 0
    %585 = vmatpush1.bf16.xpose.msra.mxu0 0
    %586 = vmatprep.subr.bf16.mxu0 0
    %587 = vmatpush1.bf16.xpose.msra.mxu0 0
    %588 = vmatprep.subr.bf16.mxu0 0
    %589 = vmatpush1.bf16.xpose.msra.mxu0 0
    %590 = vmatprep.subr.bf16.mxu0 0
    %591 = vmatpush1.bf16.xpose.msra.mxu0 0
    %592 = vmatprep.subr.bf16.mxu0 0
    %593 = vmatpush1.bf16.xpose.msra.mxu0 0
    %594 = vmatprep.subr.bf16.mxu0 0
    %595 = vmatpush1.bf16.xpose.msra.mxu0 0
    %596 = vmatprep.subr.bf16.mxu0 0
    %597 = vmatpush1.bf16.xpose.msra.mxu0 0
    %598 = vmatprep.subr.bf16.mxu0 0
    %599 = vmatpush1.bf16.xpose.msra.mxu0 0
    %600 = vmatprep.subr.bf16.mxu0 0
    %601 = vmatpush1.bf16.xpose.msra.mxu0 0
    %602 = vmatprep.subr.bf16.mxu0 0
    %603 = vmatpush1.bf16.xpose.msra.mxu0 0
    %604 = vmatprep.mubr.bf16.mxu0 0
    %605 = vmatmul.mubr.bf16.gmra.mrb[0].mxu0 %v567
    %v606 = vpop.f32.mrb[0].mxu0
    %v607 = vadd.f32 0.0, %v606
    %v608 = vpop.f32.mrb[0].mxu0
    %v609 = vpop.f32.mrb[0].mxu0
    %v610 = vpop.f32.mrb[0].mxu0
    %611 = vdwg.mxu0
    %612 = vrot.lane.b32.xlu0 %v343, 120
    %v613 = vpop.permute.xlu0 %612
    %614 = vrot.lane.b32.xlu0 %v337, 120
    %v615 = vpop.permute.xlu0 %614
    %v617 = vsel %vm350, %v613, 0
    %v620 = vsel %vm350, %v615, 0
    %622 = vmatprep.subr.bf16.mxu0 0
    %623 = vmatpush1.bf16.xpose.msra.mxu0 %v620
    %624 = vmatprep.subr.bf16.mxu0 0
    %625 = vmatpush1.bf16.xpose.msra.mxu0 0
    %626 = vmatprep.subr.bf16.mxu0 0
    %627 = vmatpush1.bf16.xpose.msra.mxu0 0
    %628 = vmatprep.subr.bf16.mxu0 0
    %629 = vmatpush1.bf16.xpose.msra.mxu0 0
    %630 = vmatprep.subr.bf16.mxu0 0
    %631 = vmatpush1.bf16.xpose.msra.mxu0 0
    %632 = vmatprep.subr.bf16.mxu0 0
    %633 = vmatpush1.bf16.xpose.msra.mxu0 0
    %634 = vmatprep.subr.bf16.mxu0 0
    %635 = vmatpush1.bf16.xpose.msra.mxu0 0
    %636 = vmatprep.subr.bf16.mxu0 0
    %637 = vmatpush1.bf16.xpose.msra.mxu0 0
    %638 = vmatprep.subr.bf16.mxu0 0
    %639 = vmatpush1.bf16.xpose.msra.mxu0 0
    %640 = vmatprep.subr.bf16.mxu0 0
    %641 = vmatpush1.bf16.xpose.msra.mxu0 0
    %642 = vmatprep.subr.bf16.mxu0 0
    %643 = vmatpush1.bf16.xpose.msra.mxu0 0
    %644 = vmatprep.subr.bf16.mxu0 0
    %645 = vmatpush1.bf16.xpose.msra.mxu0 0
    %646 = vmatprep.subr.bf16.mxu0 0
    %647 = vmatpush1.bf16.xpose.msra.mxu0 0
    %648 = vmatprep.subr.bf16.mxu0 0
    %649 = vmatpush1.bf16.xpose.msra.mxu0 0
    %650 = vmatprep.subr.bf16.mxu0 0
    %651 = vmatpush1.bf16.xpose.msra.mxu0 0
    %652 = vmatprep.subr.bf16.mxu0 0
    %653 = vmatpush1.bf16.xpose.msra.mxu0 0
    %654 = vmatprep.mubr.bf16.mxu0 0
    %655 = vmatmul.mubr.bf16.gmra.mrb[0].mxu0 %v617
    %v656 = vpop.f32.mrb[0].mxu0
    %v657 = vadd.f32 0.0, %v656
    %v658 = vpop.f32.mrb[0].mxu0
    %v659 = vpop.f32.mrb[0].mxu0
    %v660 = vpop.f32.mrb[0].mxu0
    %661 = vdwg.mxu0
    %v662 = vsel %vm350, %v607, -inf
    %663 = vmax.xlane.f32.xlu0 %v662
    %v664 = vpop.xlane.xlu0 %663
    %v665 = vsel %vm350, %v657, -inf
    %666 = vmax.xlane.f32.xlu0 %v665
    %v667 = vpop.xlane.xlu0 %666
    %v668 = vsub.f32 %v607, %v664
    %v669 = vsub.f32 %v657, %v667
    %v670 = vmul.f32 %v668, 1.442695
    %v671 = vpow.pop %v670
    %v672 = vmul.f32 %v669, 1.442695
    %v673 = vpow.pop %v672
    %v674 = vsel %vm350, %v671, 0.0
    %675 = vadd.xlane.f32.xlu0 %v674
    %v676 = vpop.xlane.xlu0 %675
    %v677 = vsel %vm350, %v673, 0.0
    %678 = vadd.xlane.f32.xlu0 %v677
    %v679 = vpop.xlane.xlu0 %678
    %v680 = vpack.c.bf16 %v671, %v671
    %v681 = vpack.c.bf16 %v673, %v673
    %682 = vrot.lane.b32.xlu0 %v348, 120
    %v683 = vpop.permute.xlu0 %682
    %v685 = vsel %vm350, %v680, 0
    %v688 = vsel %vm466, %v683, 0
    %690 = vmatprep.subr.bf16.mxu0 0
    %691 = vmatpush1.bf16.msra.mxu0 %v688
    %692 = vmatprep.subr.bf16.mxu0 0
    %693 = vmatpush1.bf16.msra.mxu0 0
    %694 = vmatprep.subr.bf16.mxu0 0
    %695 = vmatpush1.bf16.msra.mxu0 0
    %696 = vmatprep.subr.bf16.mxu0 0
    %697 = vmatpush1.bf16.msra.mxu0 0
    %698 = vmatprep.subr.bf16.mxu0 0
    %699 = vmatpush1.bf16.msra.mxu0 0
    %700 = vmatprep.subr.bf16.mxu0 0
    %701 = vmatpush1.bf16.msra.mxu0 0
    %702 = vmatprep.subr.bf16.mxu0 0
    %703 = vmatpush1.bf16.msra.mxu0 0
    %704 = vmatprep.subr.bf16.mxu0 0
    %705 = vmatpush1.bf16.msra.mxu0 0
    %706 = vmatprep.subr.bf16.mxu0 0
    %707 = vmatpush1.bf16.msra.mxu0 0
    %708 = vmatprep.subr.bf16.mxu0 0
    %709 = vmatpush1.bf16.msra.mxu0 0
    %710 = vmatprep.subr.bf16.mxu0 0
    %711 = vmatpush1.bf16.msra.mxu0 0
    %712 = vmatprep.subr.bf16.mxu0 0
    %713 = vmatpush1.bf16.msra.mxu0 0
    %714 = vmatprep.subr.bf16.mxu0 0
    %715 = vmatpush1.bf16.msra.mxu0 0
    %716 = vmatprep.subr.bf16.mxu0 0
    %717 = vmatpush1.bf16.msra.mxu0 0
    %718 = vmatprep.subr.bf16.mxu0 0
    %719 = vmatpush1.bf16.msra.mxu0 0
    %720 = vmatprep.subr.bf16.mxu0 0
    %721 = vmatpush1.bf16.msra.mxu0 0
    %722 = vmatprep.mubr.bf16.mxu0 0
    %723 = vmatmul.mubr.bf16.gmra.mrb[0].mxu0 %v685
    %v724 = vpop.f32.mrb[0].mxu0
    %v725 = vadd.f32 0.0, %v724
    %v726 = vpop.f32.mrb[0].mxu0
    %v727 = vpop.f32.mrb[0].mxu0
    %v728 = vpop.f32.mrb[0].mxu0
    %729 = vdwg.mxu0
    %730 = vrot.lane.b32.xlu0 %v349, 120
    %v731 = vpop.permute.xlu0 %730
    %v733 = vsel %vm350, %v681, 0
    %v736 = vsel %vm466, %v731, 0
    %738 = vmatprep.subr.bf16.mxu0 0
    %739 = vmatpush1.bf16.msra.mxu0 %v736
    %740 = vmatprep.subr.bf16.mxu0 0
    %741 = vmatpush1.bf16.msra.mxu0 0
    %742 = vmatprep.subr.bf16.mxu0 0
    %743 = vmatpush1.bf16.msra.mxu0 0
    %744 = vmatprep.subr.bf16.mxu0 0
    %745 = vmatpush1.bf16.msra.mxu0 0
    %746 = vmatprep.subr.bf16.mxu0 0
    %747 = vmatpush1.bf16.msra.mxu0 0
    %748 = vmatprep.subr.bf16.mxu0 0
    %749 = vmatpush1.bf16.msra.mxu0 0
    %750 = vmatprep.subr.bf16.mxu0 0
    %751 = vmatpush1.bf16.msra.mxu0 0
    %752 = vmatprep.subr.bf16.mxu0 0
    %753 = vmatpush1.bf16.msra.mxu0 0
    %754 = vmatprep.subr.bf16.mxu0 0
    %755 = vmatpush1.bf16.msra.mxu0 0
    %756 = vmatprep.subr.bf16.mxu0 0
    %757 = vmatpush1.bf16.msra.mxu0 0
    %758 = vmatprep.subr.bf16.mxu0 0
    %759 = vmatpush1.bf16.msra.mxu0 0
    %760 = vmatprep.subr.bf16.mxu0 0
    %761 = vmatpush1.bf16.msra.mxu0 0
    %762 = vmatprep.subr.bf16.mxu0 0
    %763 = vmatpush1.bf16.msra.mxu0 0
    %764 = vmatprep.subr.bf16.mxu0 0
    %765 = vmatpush1.bf16.msra.mxu0 0
    %766 = vmatprep.subr.bf16.mxu0 0
    %767 = vmatpush1.bf16.msra.mxu0 0
    %768 = vmatprep.subr.bf16.mxu0 0
    %769 = vmatpush1.bf16.msra.mxu0 0
    %770 = vmatprep.mubr.bf16.mxu0 0
    %771 = vmatmul.mubr.bf16.gmra.mrb[0].mxu0 %v733
    %v772 = vpop.f32.mrb[0].mxu0
    %v773 = vadd.f32 0.0, %v772
    %v774 = vpop.f32.mrb[0].mxu0
    %v775 = vpop.f32.mrb[0].mxu0
    %v776 = vpop.f32.mrb[0].mxu0
    %777 = vdwg.mxu0
    %v778 = vrcp.pop %v676
    %v779 = vrcp.pop %v679
    %v780 = vmul.f32 %v725, %v778
    %v781 = vmul.f32 %v773, %v779
    %v782 = vpack.c.bf16 %v780, %v780
    %v783 = vpack.c.bf16 %v781, %v781
    %v786 = vunpack.c.l.b16 %v782
    %v787 = vunpack.c.l.b16 %v783
    %v788 = vpack.c.b16 %v787, %v786
    %v790 = vsel %vm350, %v788, 0
    %v793 = vsel %vm466, %v129, 0
    %795 = vmatprep.subr.bf16.mxu0 0
    %796 = vmatpush1.bf16.msra.mxu0 %v793
    %797 = vmatprep.subr.bf16.mxu0 0
    %798 = vmatpush1.bf16.msra.mxu0 0
    %799 = vmatprep.subr.bf16.mxu0 0
    %800 = vmatpush1.bf16.msra.mxu0 0
    %801 = vmatprep.subr.bf16.mxu0 0
    %802 = vmatpush1.bf16.msra.mxu0 0
    %803 = vmatprep.subr.bf16.mxu0 0
    %804 = vmatpush1.bf16.msra.mxu0 0
    %805 = vmatprep.subr.bf16.mxu0 0
    %806 = vmatpush1.bf16.msra.mxu0 0
    %807 = vmatprep.subr.bf16.mxu0 0
    %808 = vmatpush1.bf16.msra.mxu0 0
    %809 = vmatprep.subr.bf16.mxu0 0
    %810 = vmatpush1.bf16.msra.mxu0 0
    %811 = vmatprep.subr.bf16.mxu0 0
    %812 = vmatpush1.bf16.msra.mxu0 0
    %813 = vmatprep.subr.bf16.mxu0 0
    %814 = vmatpush1.bf16.msra.mxu0 0
    %815 = vmatprep.subr.bf16.mxu0 0
    %816 = vmatpush1.bf16.msra.mxu0 0
    %817 = vmatprep.subr.bf16.mxu0 0
    %818 = vmatpush1.bf16.msra.mxu0 0
    %819 = vmatprep.subr.bf16.mxu0 0
    %820 = vmatpush1.bf16.msra.mxu0 0
    %821 = vmatprep.subr.bf16.mxu0 0
    %822 = vmatpush1.bf16.msra.mxu0 0
    %823 = vmatprep.subr.bf16.mxu0 0
    %824 = vmatpush1.bf16.msra.mxu0 0
    %825 = vmatprep.subr.bf16.mxu0 0
    %826 = vmatpush1.bf16.msra.mxu0 0
    %827 = vmatprep.mubr.bf16.mxu0 0
    %828 = vmatmul.mubr.bf16.gmra.mrb[0].mxu0 %v790
    %v829 = vpop.f32.mrb[0].mxu0
    %v830 = vadd.f32 0.0, %v829
    %v831 = vpop.f32.mrb[0].mxu0
    %v832 = vpop.f32.mrb[0].mxu0
    %v833 = vadd.f32 0.0, %v832
    %v834 = vpop.f32.mrb[0].mxu0
    %835 = vdwg.mxu0
    %v838 = vunpack.c.l.b16 %v560
    %v839 = vunpack.c.l.b16 %v561
    %v840 = vpack.c.b16 %v839, %v838
    %v842 = vsel %vm350, %v840, 0
    %v845 = vsel %vm466, %v128, 0
    %847 = vmatprep.subr.bf16.mxu0 0
    %848 = vmatpush1.bf16.msra.mxu0 %v845
    %849 = vmatprep.subr.bf16.mxu0 0
    %850 = vmatpush1.bf16.msra.mxu0 0
    %851 = vmatprep.subr.bf16.mxu0 0
    %852 = vmatpush1.bf16.msra.mxu0 0
    %853 = vmatprep.subr.bf16.mxu0 0
    %854 = vmatpush1.bf16.msra.mxu0 0
    %855 = vmatprep.subr.bf16.mxu0 0
    %856 = vmatpush1.bf16.msra.mxu0 0
    %857 = vmatprep.subr.bf16.mxu0 0
    %858 = vmatpush1.bf16.msra.mxu0 0
    %859 = vmatprep.subr.bf16.mxu0 0
    %860 = vmatpush1.bf16.msra.mxu0 0
    %861 = vmatprep.subr.bf16.mxu0 0
    %862 = vmatpush1.bf16.msra.mxu0 0
    %863 = vmatprep.subr.bf16.mxu0 0
    %864 = vmatpush1.bf16.msra.mxu0 0
    %865 = vmatprep.subr.bf16.mxu0 0
    %866 = vmatpush1.bf16.msra.mxu0 0
    %867 = vmatprep.subr.bf16.mxu0 0
    %868 = vmatpush1.bf16.msra.mxu0 0
    %869 = vmatprep.subr.bf16.mxu0 0
    %870 = vmatpush1.bf16.msra.mxu0 0
    %871 = vmatprep.subr.bf16.mxu0 0
    %872 = vmatpush1.bf16.msra.mxu0 0
    %873 = vmatprep.subr.bf16.mxu0 0
    %874 = vmatpush1.bf16.msra.mxu0 0
    %875 = vmatprep.subr.bf16.mxu0 0
    %876 = vmatpush1.bf16.msra.mxu0 0
    %877 = vmatprep.subr.bf16.mxu0 0
    %878 = vmatpush1.bf16.msra.mxu0 0
    %879 = vmatprep.mubr.bf16.mxu0 0
    %880 = vmatmul.mubr.bf16.gmra.mrb[0].mxu0 %v842
    %v881 = vpop.f32.mrb[0].mxu0
    %v882 = vadd.f32 %v830, %v881
    %v883 = vpop.f32.mrb[0].mxu0
    %v884 = vpop.f32.mrb[0].mxu0
    %v885 = vadd.f32 %v833, %v884
    %v886 = vpop.f32.mrb[0].mxu0
    %887 = vdwg.mxu0
    %888 = vrot.lane.b32.xlu0 %v342, 112
    %v889 = vpop.permute.xlu0 %888
    %890 = vrot.lane.b32.xlu0 %v336, 112
    %v891 = vpop.permute.xlu0 %890
    %v893 = vsel %vm350, %v889, 0
    %v896 = vsel %vm350, %v891, 0
    %898 = vmatprep.subr.bf16.mxu0 0
    %899 = vmatpush1.bf16.xpose.msra.mxu0 %v896
    %900 = vmatprep.subr.bf16.mxu0 0
    %901 = vmatpush1.bf16.xpose.msra.mxu0 0
    %902 = vmatprep.subr.bf16.mxu0 0
    %903 = vmatpush1.bf16.xpose.msra.mxu0 0
    %904 = vmatprep.subr.bf16.mxu0 0
    %905 = vmatpush1.bf16.xpose.msra.mxu0 0
    %906 = vmatprep.subr.bf16.mxu0 0
    %907 = vmatpush1.bf16.xpose.msra.mxu0 0
    %908 = vmatprep.subr.bf16.mxu0 0
    %909 = vmatpush1.bf16.xpose.msra.mxu0 0
    %910 = vmatprep.subr.bf16.mxu0 0
    %911 = vmatpush1.bf16.xpose.msra.mxu0 0
    %912 = vmatprep.subr.bf16.mxu0 0
    %913 = vmatpush1.bf16.xpose.msra.mxu0 0
    %914 = vmatprep.subr.bf16.mxu0 0
    %915 = vmatpush1.bf16.xpose.msra.mxu0 0
    %916 = vmatprep.subr.bf16.mxu0 0
    %917 = vmatpush1.bf16.xpose.msra.mxu0 0
    %918 = vmatprep.subr.bf16.mxu0 0
    %919 = vmatpush1.bf16.xpose.msra.mxu0 0
    %920 = vmatprep.subr.bf16.mxu0 0
    %921 = vmatpush1.bf16.xpose.msra.mxu0 0
    %922 = vmatprep.subr.bf16.mxu0 0
    %923 = vmatpush1.bf16.xpose.msra.mxu0 0
    %924 = vmatprep.subr.bf16.mxu0 0
    %925 = vmatpush1.bf16.xpose.msra.mxu0 0
    %926 = vmatprep.subr.bf16.mxu0 0
    %927 = vmatpush1.bf16.xpose.msra.mxu0 0
    %928 = vmatprep.subr.bf16.mxu0 0
    %929 = vmatpush1.bf16.xpose.msra.mxu0 0
    %930 = vmatprep.mubr.bf16.mxu0 0
    %931 = vmatmul.mubr.bf16.gmra.mrb[0].mxu0 %v893
    %v932 = vpop.f32.mrb[0].mxu0
    %v933 = vadd.f32 0.0, %v932
    %v934 = vpop.f32.mrb[0].mxu0
    %v935 = vpop.f32.mrb[0].mxu0
    %v936 = vpop.f32.mrb[0].mxu0
    %937 = vdwg.mxu0
    %938 = vrot.lane.b32.xlu0 %v343, 112
    %v939 = vpop.permute.xlu0 %938
    %940 = vrot.lane.b32.xlu0 %v337, 112
    %v941 = vpop.permute.xlu0 %940
    %v943 = vsel %vm350, %v939, 0
    %v946 = vsel %vm350, %v941, 0
    %948 = vmatprep.subr.bf16.mxu0 0
    %949 = vmatpush1.bf16.xpose.msra.mxu0 %v946
    %950 = vmatprep.subr.bf16.mxu0 0
    %951 = vmatpush1.bf16.xpose.msra.mxu0 0
    %952 = vmatprep.subr.bf16.mxu0 0
    %953 = vmatpush1.bf16.xpose.msra.mxu0 0
    %954 = vmatprep.subr.bf16.mxu0 0
    %955 = vmatpush1.bf16.xpose.msra.mxu0 0
    %956 = vmatprep.subr.bf16.mxu0 0
    %957 = vmatpush1.bf16.xpose.msra.mxu0 0
    %958 = vmatprep.subr.bf16.mxu0 0
    %959 = vmatpush1.bf16.xpose.msra.mxu0 0
    %960 = vmatprep.subr.bf16.mxu0 0
    %961 = vmatpush1.bf16.xpose.msra.mxu0 0
    %962 = vmatprep.subr.bf16.mxu0 0
    %963 = vmatpush1.bf16.xpose.msra.mxu0 0
    %964 = vmatprep.subr.bf16.mxu0 0
    %965 = vmatpush1.bf16.xpose.msra.mxu0 0
    %966 = vmatprep.subr.bf16.mxu0 0
    %967 = vmatpush1.bf16.xpose.msra.mxu0 0
    %968 = vmatprep.subr.bf16.mxu0 0
    %969 = vmatpush1.bf16.xpose.msra.mxu0 0
    %970 = vmatprep.subr.bf16.mxu0 0
    %971 = vmatpush1.bf16.xpose.msra.mxu0 0
    %972 = vmatprep.subr.bf16.mxu0 0
    %973 = vmatpush1.bf16.xpose.msra.mxu0 0
    %974 = vmatprep.subr.bf16.mxu0 0
    %975 = vmatpush1.bf16.xpose.msra.mxu0 0
    %976 = vmatprep.subr.bf16.mxu0 0
    %977 = vmatpush1.bf16.xpose.msra.mxu0 0
    %978 = vmatprep.subr.bf16.mxu0 0
    %979 = vmatpush1.bf16.xpose.msra.mxu0 0
    %980 = vmatprep.mubr.bf16.mxu0 0
    %981 = vmatmul.mubr.bf16.gmra.mrb[0].mxu0 %v943
    %v982 = vpop.f32.mrb[0].mxu0
    %v983 = vadd.f32 0.0, %v982
    %v984 = vpop.f32.mrb[0].mxu0
    %v985 = vpop.f32.mrb[0].mxu0
    %v986 = vpop.f32.mrb[0].mxu0
    %987 = vdwg.mxu0
    %v988 = vsel %vm350, %v933, -inf
    %989 = vmax.xlane.f32.xlu0 %v988
    %v990 = vpop.xlane.xlu0 %989
    %v991 = vsel %vm350, %v983, -inf
    %992 = vmax.xlane.f32.xlu0 %v991
    %v993 = vpop.xlane.xlu0 %992
    %v994 = vsub.f32 %v933, %v990
    %v995 = vsub.f32 %v983, %v993
    %v996 = vmul.f32 %v994, 1.442695
    %v997 = vpow.pop %v996
    %v998 = vmul.f32 %v995, 1.442695
    %v999 = vpow.pop %v998
    %v1000 = vsel %vm350, %v997, 0.0
    %1001 = vadd.xlane.f32.xlu0 %v1000
    %v1002 = vpop.xlane.xlu0 %1001
    %v1003 = vsel %vm350, %v999, 0.0
    %1004 = vadd.xlane.f32.xlu0 %v1003
    %v1005 = vpop.xlane.xlu0 %1004
    %v1006 = vpack.c.bf16 %v997, %v997
    %v1007 = vpack.c.bf16 %v999, %v999
    %1008 = vrot.lane.b32.xlu0 %v348, 112
    %v1009 = vpop.permute.xlu0 %1008
    %v1011 = vsel %vm350, %v1006, 0
    %v1014 = vsel %vm466, %v1009, 0
    %1016 = vmatprep.subr.bf16.mxu0 0
    %1017 = vmatpush1.bf16.msra.mxu0 %v1014
    %1018 = vmatprep.subr.bf16.mxu0 0
    %1019 = vmatpush1.bf16.msra.mxu0 0
    %1020 = vmatprep.subr.bf16.mxu0 0
    %1021 = vmatpush1.bf16.msra.mxu0 0
    %1022 = vmatprep.subr.bf16.mxu0 0
    %1023 = vmatpush1.bf16.msra.mxu0 0
    %1024 = vmatprep.subr.bf16.mxu0 0
    %1025 = vmatpush1.bf16.msra.mxu0 0
    %1026 = vmatprep.subr.bf16.mxu0 0
    %1027 = vmatpush1.bf16.msra.mxu0 0
    %1028 = vmatprep.subr.bf16.mxu0 0
    %1029 = vmatpush1.bf16.msra.mxu0 0
    %1030 = vmatprep.subr.bf16.mxu0 0
    %1031 = vmatpush1.bf16.msra.mxu0 0
    %1032 = vmatprep.subr.bf16.mxu0 0
    %1033 = vmatpush1.bf16.msra.mxu0 0
    %1034 = vmatprep.subr.bf16.mxu0 0
    %1035 = vmatpush1.bf16.msra.mxu0 0
    %1036 = vmatprep.subr.bf16.mxu0 0
    %1037 = vmatpush1.bf16.msra.mxu0 0
    %1038 = vmatprep.subr.bf16.mxu0 0
    %1039 = vmatpush1.bf16.msra.mxu0 0
    %1040 = vmatprep.subr.bf16.mxu0 0
    %1041 = vmatpush1.bf16.msra.mxu0 0
    %1042 = vmatprep.subr.bf16.mxu0 0
    %1043 = vmatpush1.bf16.msra.mxu0 0
    %1044 = vmatprep.subr.bf16.mxu0 0
    %1045 = vmatpush1.bf16.msra.mxu0 0
    %1046 = vmatprep.subr.bf16.mxu0 0
    %1047 = vmatpush1.bf16.msra.mxu0 0
    %1048 = vmatprep.mubr.bf16.mxu0 0
    %1049 = vmatmul.mubr.bf16.gmra.mrb[0].mxu0 %v1011
    %v1050 = vpop.f32.mrb[0].mxu0
    %v1051 = vadd.f32 0.0, %v1050
    %v1052 = vpop.f32.mrb[0].mxu0
    %v1053 = vpop.f32.mrb[0].mxu0
    %v1054 = vpop.f32.mrb[0].mxu0
    %1055 = vdwg.mxu0
    %1056 = vrot.lane.b32.xlu0 %v349, 112
    %v1057 = vpop.permute.xlu0 %1056
    %v1059 = vsel %vm350, %v1007, 0
    %v1062 = vsel %vm466, %v1057, 0
    %1064 = vmatprep.subr.bf16.mxu0 0
    %1065 = vmatpush1.bf16.msra.mxu0 %v1062
    %1066 = vmatprep.subr.bf16.mxu0 0
    %1067 = vmatpush1.bf16.msra.mxu0 0
    %1068 = vmatprep.subr.bf16.mxu0 0
    %1069 = vmatpush1.bf16.msra.mxu0 0
    %1070 = vmatprep.subr.bf16.mxu0 0
    %1071 = vmatpush1.bf16.msra.mxu0 0
    %1072 = vmatprep.subr.bf16.mxu0 0
    %1073 = vmatpush1.bf16.msra.mxu0 0
    %1074 = vmatprep.subr.bf16.mxu0 0
    %1075 = vmatpush1.bf16.msra.mxu0 0
    %1076 = vmatprep.subr.bf16.mxu0 0
    %1077 = vmatpush1.bf16.msra.mxu0 0
    %1078 = vmatprep.subr.bf16.mxu0 0
    %1079 = vmatpush1.bf16.msra.mxu0 0
    %1080 = vmatprep.subr.bf16.mxu0 0
    %1081 = vmatpush1.bf16.msra.mxu0 0
    %1082 = vmatprep.subr.bf16.mxu0 0
    %1083 = vmatpush1.bf16.msra.mxu0 0
    %1084 = vmatprep.subr.bf16.mxu0 0
    %1085 = vmatpush1.bf16.msra.mxu0 0
    %1086 = vmatprep.subr.bf16.mxu0 0
    %1087 = vmatpush1.bf16.msra.mxu0 0
    %1088 = vmatprep.subr.bf16.mxu0 0
    %1089 = vmatpush1.bf16.msra.mxu0 0
    %1090 = vmatprep.subr.bf16.mxu0 0
    %1091 = vmatpush1.bf16.msra.mxu0 0
    %1092 = vmatprep.subr.bf16.mxu0 0
    %1093 = vmatpush1.bf16.msra.mxu0 0
    %1094 = vmatprep.subr.bf16.mxu0 0
    %1095 = vmatpush1.bf16.msra.mxu0 0
    %1096 = vmatprep.mubr.bf16.mxu0 0
    %1097 = vmatmul.mubr.bf16.gmra.mrb[0].mxu0 %v1059
    %v1098 = vpop.f32.mrb[0].mxu0
    %v1099 = vadd.f32 0.0, %v1098
    %v1100 = vpop.f32.mrb[0].mxu0
    %v1101 = vpop.f32.mrb[0].mxu0
    %v1102 = vpop.f32.mrb[0].mxu0
    %1103 = vdwg.mxu0
    %v1104 = vrcp.pop %v1002
    %v1105 = vrcp.pop %v1005
    %v1106 = vmul.f32 %v1051, %v1104
    %v1107 = vmul.f32 %v1099, %v1105
    %v1108 = vpack.c.bf16 %v1106, %v1106
    %v1109 = vpack.c.bf16 %v1107, %v1107
    %v1112 = vunpack.c.l.b16 %v1108
    %v1113 = vunpack.c.l.b16 %v1109
    %v1114 = vpack.c.b16 %v1113, %v1112
    %v1116 = vsel %vm350, %v1114, 0
    %v1119 = vsel %vm466, %v130, 0
    %1121 = vmatprep.subr.bf16.mxu0 0
    %1122 = vmatpush1.bf16.msra.mxu0 %v1119
    %1123 = vmatprep.subr.bf16.mxu0 0
    %1124 = vmatpush1.bf16.msra.mxu0 0
    %1125 = vmatprep.subr.bf16.mxu0 0
    %1126 = vmatpush1.bf16.msra.mxu0 0
    %1127 = vmatprep.subr.bf16.mxu0 0
    %1128 = vmatpush1.bf16.msra.mxu0 0
    %1129 = vmatprep.subr.bf16.mxu0 0
    %1130 = vmatpush1.bf16.msra.mxu0 0
    %1131 = vmatprep.subr.bf16.mxu0 0
    %1132 = vmatpush1.bf16.msra.mxu0 0
    %1133 = vmatprep.subr.bf16.mxu0 0
    %1134 = vmatpush1.bf16.msra.mxu0 0
    %1135 = vmatprep.subr.bf16.mxu0 0
    %1136 = vmatpush1.bf16.msra.mxu0 0
    %1137 = vmatprep.subr.bf16.mxu0 0
    %1138 = vmatpush1.bf16.msra.mxu0 0
    %1139 = vmatprep.subr.bf16.mxu0 0
    %1140 = vmatpush1.bf16.msra.mxu0 0
    %1141 = vmatprep.subr.bf16.mxu0 0
    %1142 = vmatpush1.bf16.msra.mxu0 0
    %1143 = vmatprep.subr.bf16.mxu0 0
    %1144 = vmatpush1.bf16.msra.mxu0 0
    %1145 = vmatprep.subr.bf16.mxu0 0
    %1146 = vmatpush1.bf16.msra.mxu0 0
    %1147 = vmatprep.subr.bf16.mxu0 0
    %1148 = vmatpush1.bf16.msra.mxu0 0
    %1149 = vmatprep.subr.bf16.mxu0 0
    %1150 = vmatpush1.bf16.msra.mxu0 0
    %1151 = vmatprep.subr.bf16.mxu0 0
    %1152 = vmatpush1.bf16.msra.mxu0 0
    %1153 = vmatprep.mubr.bf16.mxu0 0
    %1154 = vmatmul.mubr.bf16.gmra.mrb[0].mxu0 %v1116
    %v1155 = vpop.f32.mrb[0].mxu0
    %v1156 = vadd.f32 0.0, %v1155
    %v1157 = vpop.f32.mrb[0].mxu0
    %v1158 = vpop.f32.mrb[0].mxu0
    %v1159 = vadd.f32 0.0, %v1158
    %v1160 = vpop.f32.mrb[0].mxu0
    %1161 = vdwg.mxu0
    %v1162 = vadd.f32 %v882, %v1156
    %v1163 = vadd.f32 %v885, %v1159
    %1164 = vrot.lane.b32.xlu0 %v342, 104
    %v1165 = vpop.permute.xlu0 %1164
    %1166 = vrot.lane.b32.xlu0 %v336, 104
    %v1167 = vpop.permute.xlu0 %1166
    %v1169 = vsel %vm350, %v1165, 0
    %v1172 = vsel %vm350, %v1167, 0
    %1174 = vmatprep.subr.bf16.mxu0 0
    %1175 = vmatpush1.bf16.xpose.msra.mxu0 %v1172
    %1176 = vmatprep.subr.bf16.mxu0 0
    %1177 = vmatpush1.bf16.xpose.msra.mxu0 0
    %1178 = vmatprep.subr.bf16.mxu0 0
    %1179 = vmatpush1.bf16.xpose.msra.mxu0 0
    %1180 = vmatprep.subr.bf16.mxu0 0
    %1181 = vmatpush1.bf16.xpose.msra.mxu0 0
    %1182 = vmatprep.subr.bf16.mxu0 0
    %1183 = vmatpush1.bf16.xpose.msra.mxu0 0
    %1184 = vmatprep.subr.bf16.mxu0 0
    %1185 = vmatpush1.bf16.xpose.msra.mxu0 0
    %1186 = vmatprep.subr.bf16.mxu0 0
    %1187 = vmatpush1.bf16.xpose.msra.mxu0 0
    %1188 = vmatprep.subr.bf16.mxu0 0
    %1189 = vmatpush1.bf16.xpose.msra.mxu0 0
    %1190 = vmatprep.subr.bf16.mxu0 0
    %1191 = vmatpush1.bf16.xpose.msra.mxu0 0
    %1192 = vmatprep.subr.bf16.mxu0 0
    %1193 = vmatpush1.bf16.xpose.msra.mxu0 0
    %1194 = vmatprep.subr.bf16.mxu0 0
    %1195 = vmatpush1.bf16.xpose.msra.mxu0 0
    %1196 = vmatprep.subr.bf16.mxu0 0
    %1197 = vmatpush1.bf16.xpose.msra.mxu0 0
    %1198 = vmatprep.subr.bf16.mxu0 0
    %1199 = vmatpush1.bf16.xpose.msra.mxu0 0
    %1200 = vmatprep.subr.bf16.mxu0 0
    %1201 = vmatpush1.bf16.xpose.msra.mxu0 0
    %1202 = vmatprep.subr.bf16.mxu0 0
    %1203 = vmatpush1.bf16.xpose.msra.mxu0 0
    %1204 = vmatprep.subr.bf16.mxu0 0
    %1205 = vmatpush1.bf16.xpose.msra.mxu0 0
    %1206 = vmatprep.mubr.bf16.mxu0 0
    %1207 = vmatmul.mubr.bf16.gmra.mrb[0].mxu0 %v1169
    %v1208 = vpop.f32.mrb[0].mxu0
    %v1209 = vadd.f32 0.0, %v1208
    %v1210 = vpop.f32.mrb[0].mxu0
    %v1211 = vpop.f32.mrb[0].mxu0
    %v1212 = vpop.f32.mrb[0].mxu0
    %1213 = vdwg.mxu0
    %1214 = vrot.lane.b32.xlu0 %v343, 104
    %v1215 = vpop.permute.xlu0 %1214
    %1216 = vrot.lane.b32.xlu0 %v337, 104
    %v1217 = vpop.permute.xlu0 %1216
    %v1219 = vsel %vm350, %v1215, 0
    %v1222 = vsel %vm350, %v1217, 0
    %1224 = vmatprep.subr.bf16.mxu0 0
    %1225 = vmatpush1.bf16.xpose.msra.mxu0 %v1222
    %1226 = vmatprep.subr.bf16.mxu0 0
    %1227 = vmatpush1.bf16.xpose.msra.mxu0 0
    %1228 = vmatprep.subr.bf16.mxu0 0
    %1229 = vmatpush1.bf16.xpose.msra.mxu0 0
    %1230 = vmatprep.subr.bf16.mxu0 0
    %1231 = vmatpush1.bf16.xpose.msra.mxu0 0
    %1232 = vmatprep.subr.bf16.mxu0 0
    %1233 = vmatpush1.bf16.xpose.msra.mxu0 0
    %1234 = vmatprep.subr.bf16.mxu0 0
    %1235 = vmatpush1.bf16.xpose.msra.mxu0 0
    %1236 = vmatprep.subr.bf16.mxu0 0
    %1237 = vmatpush1.bf16.xpose.msra.mxu0 0
    %1238 = vmatprep.subr.bf16.mxu0 0
    %1239 = vmatpush1.bf16.xpose.msra.mxu0 0
    %1240 = vmatprep.subr.bf16.mxu0 0
    %1241 = vmatpush1.bf16.xpose.msra.mxu0 0
    %1242 = vmatprep.subr.bf16.mxu0 0
    %1243 = vmatpush1.bf16.xpose.msra.mxu0 0
    %1244 = vmatprep.subr.bf16.mxu0 0
    %1245 = vmatpush1.bf16.xpose.msra.mxu0 0
    %1246 = vmatprep.subr.bf16.mxu0 0
    %1247 = vmatpush1.bf16.xpose.msra.mxu0 0
    %1248 = vmatprep.subr.bf16.mxu0 0
    %1249 = vmatpush1.bf16.xpose.msra.mxu0 0
    %1250 = vmatprep.subr.bf16.mxu0 0
    %1251 = vmatpush1.bf16.xpose.msra.mxu0 0
    %1252 = vmatprep.subr.bf16.mxu0 0
    %1253 = vmatpush1.bf16.xpose.msra.mxu0 0
    %1254 = vmatprep.subr.bf16.mxu0 0
    %1255 = vmatpush1.bf16.xpose.msra.mxu0 0
    %1256 = vmatprep.mubr.bf16.mxu0 0
    %1257 = vmatmul.mubr.bf16.gmra.mrb[0].mxu0 %v1219
    %v1258 = vpop.f32.mrb[0].mxu0
    %v1259 = vadd.f32 0.0, %v1258
    %v1260 = vpop.f32.mrb[0].mxu0
    %v1261 = vpop.f32.mrb[0].mxu0
    %v1262 = vpop.f32.mrb[0].mxu0
    %1263 = vdwg.mxu0
    %v1264 = vsel %vm350, %v1209, -inf
    %1265 = vmax.xlane.f32.xlu0 %v1264
    %v1266 = vpop.xlane.xlu0 %1265
    %v1267 = vsel %vm350, %v1259, -inf
    %1268 = vmax.xlane.f32.xlu0 %v1267
    %v1269 = vpop.xlane.xlu0 %1268
    %v1270 = vsub.f32 %v1209, %v1266
    %v1271 = vsub.f32 %v1259, %v1269
    %v1272 = vmul.f32 %v1270, 1.442695
    %v1273 = vpow.pop %v1272
    %v1274 = vmul.f32 %v1271, 1.442695
    %v1275 = vpow.pop %v1274
    %v1276 = vsel %vm350, %v1273, 0.0
    %1277 = vadd.xlane.f32.xlu0 %v1276
    %v1278 = vpop.xlane.xlu0 %1277
    %v1279 = vsel %vm350, %v1275, 0.0
    %1280 = vadd.xlane.f32.xlu0 %v1279
    %v1281 = vpop.xlane.xlu0 %1280
    %v1282 = vpack.c.bf16 %v1273, %v1273
    %v1283 = vpack.c.bf16 %v1275, %v1275
    %1284 = vrot.lane.b32.xlu0 %v348, 104
    %v1285 = vpop.permute.xlu0 %1284
    %v1287 = vsel %vm350, %v1282, 0
    %v1290 = vsel %vm466, %v1285, 0
    %1292 = vmatprep.subr.bf16.mxu0 0
    %1293 = vmatpush1.bf16.msra.mxu0 %v1290
    %1294 = vmatprep.subr.bf16.mxu0 0
    %1295 = vmatpush1.bf16.msra.mxu0 0
    %1296 = vmatprep.subr.bf16.mxu0 0
    %1297 = vmatpush1.bf16.msra.mxu0 0
    %1298 = vmatprep.subr.bf16.mxu0 0
    %1299 = vmatpush1.bf16.msra.mxu0 0
    %1300 = vmatprep.subr.bf16.mxu0 0
    %1301 = vmatpush1.bf16.msra.mxu0 0
    %1302 = vmatprep.subr.bf16.mxu0 0
    %1303 = vmatpush1.bf16.msra.mxu0 0
    %1304 = vmatprep.subr.bf16.mxu0 0
    %1305 = vmatpush1.bf16.msra.mxu0 0
    %1306 = vmatprep.subr.bf16.mxu0 0
    %1307 = vmatpush1.bf16.msra.mxu0 0
    %1308 = vmatprep.subr.bf16.mxu0 0
    %1309 = vmatpush1.bf16.msra.mxu0 0
    %1310 = vmatprep.subr.bf16.mxu0 0
    %1311 = vmatpush1.bf16.msra.mxu0 0
    %1312 = vmatprep.subr.bf16.mxu0 0
    %1313 = vmatpush1.bf16.msra.mxu0 0
    %1314 = vmatprep.subr.bf16.mxu0 0
    %1315 = vmatpush1.bf16.msra.mxu0 0
    %1316 = vmatprep.subr.bf16.mxu0 0
    %1317 = vmatpush1.bf16.msra.mxu0 0
    %1318 = vmatprep.subr.bf16.mxu0 0
    %1319 = vmatpush1.bf16.msra.mxu0 0
    %1320 = vmatprep.subr.bf16.mxu0 0
    %1321 = vmatpush1.bf16.msra.mxu0 0
    %1322 = vmatprep.subr.bf16.mxu0 0
    %1323 = vmatpush1.bf16.msra.mxu0 0
    %1324 = vmatprep.mubr.bf16.mxu0 0
    %1325 = vmatmul.mubr.bf16.gmra.mrb[0].mxu0 %v1287
    %v1326 = vpop.f32.mrb[0].mxu0
    %v1327 = vadd.f32 0.0, %v1326
    %v1328 = vpop.f32.mrb[0].mxu0
    %v1329 = vpop.f32.mrb[0].mxu0
    %v1330 = vpop.f32.mrb[0].mxu0
    %1331 = vdwg.mxu0
    %1332 = vrot.lane.b32.xlu0 %v349, 104
    %v1333 = vpop.permute.xlu0 %1332
    %v1335 = vsel %vm350, %v1283, 0
    %v1338 = vsel %vm466, %v1333, 0
    %1340 = vmatprep.subr.bf16.mxu0 0
    %1341 = vmatpush1.bf16.msra.mxu0 %v1338
    %1342 = vmatprep.subr.bf16.mxu0 0
    %1343 = vmatpush1.bf16.msra.mxu0 0
    %1344 = vmatprep.subr.bf16.mxu0 0
    %1345 = vmatpush1.bf16.msra.mxu0 0
    %1346 = vmatprep.subr.bf16.mxu0 0
    %1347 = vmatpush1.bf16.msra.mxu0 0
    %1348 = vmatprep.subr.bf16.mxu0 0
    %1349 = vmatpush1.bf16.msra.mxu0 0
    %1350 = vmatprep.subr.bf16.mxu0 0
    %1351 = vmatpush1.bf16.msra.mxu0 0
    %1352 = vmatprep.subr.bf16.mxu0 0
    %1353 = vmatpush1.bf16.msra.mxu0 0
    %1354 = vmatprep.subr.bf16.mxu0 0
    %1355 = vmatpush1.bf16.msra.mxu0 0
    %1356 = vmatprep.subr.bf16.mxu0 0
    %1357 = vmatpush1.bf16.msra.mxu0 0
    %1358 = vmatprep.subr.bf16.mxu0 0
    %1359 = vmatpush1.bf16.msra.mxu0 0
    %1360 = vmatprep.subr.bf16.mxu0 0
    %1361 = vmatpush1.bf16.msra.mxu0 0
    %1362 = vmatprep.subr.bf16.mxu0 0
    %1363 = vmatpush1.bf16.msra.mxu0 0
    %1364 = vmatprep.subr.bf16.mxu0 0
    %1365 = vmatpush1.bf16.msra.mxu0 0
    %1366 = vmatprep.subr.bf16.mxu0 0
    %1367 = vmatpush1.bf16.msra.mxu0 0
    %1368 = vmatprep.subr.bf16.mxu0 0
    %1369 = vmatpush1.bf16.msra.mxu0 0
    %1370 = vmatprep.subr.bf16.mxu0 0
    %1371 = vmatpush1.bf16.msra.mxu0 0
    %1372 = vmatprep.mubr.bf16.mxu0 0
    %1373 = vmatmul.mubr.bf16.gmra.mrb[0].mxu0 %v1335
    %v1374 = vpop.f32.mrb[0].mxu0
    %v1375 = vadd.f32 0.0, %v1374
    %v1376 = vpop.f32.mrb[0].mxu0
    %v1377 = vpop.f32.mrb[0].mxu0
    %v1378 = vpop.f32.mrb[0].mxu0
    %1379 = vdwg.mxu0
    %v1380 = vrcp.pop %v1278
    %v1381 = vrcp.pop %v1281
    %v1382 = vmul.f32 %v1327, %v1380
    %v1383 = vmul.f32 %v1375, %v1381
    %v1384 = vpack.c.bf16 %v1382, %v1382
    %v1385 = vpack.c.bf16 %v1383, %v1383
    %v1388 = vunpack.c.l.b16 %v1384
    %v1389 = vunpack.c.l.b16 %v1385
    %v1390 = vpack.c.b16 %v1389, %v1388
    %v1392 = vsel %vm350, %v1390, 0
    %v1395 = vsel %vm466, %v131, 0
    %1397 = vmatprep.subr.bf16.mxu0 0
    %1398 = vmatpush1.bf16.msra.mxu0 %v1395
    %1399 = vmatprep.subr.bf16.mxu0 0
    %1400 = vmatpush1.bf16.msra.mxu0 0
    %1401 = vmatprep.subr.bf16.mxu0 0
    %1402 = vmatpush1.bf16.msra.mxu0 0
    %1403 = vmatprep.subr.bf16.mxu0 0
    %1404 = vmatpush1.bf16.msra.mxu0 0
    %1405 = vmatprep.subr.bf16.mxu0 0
    %1406 = vmatpush1.bf16.msra.mxu0 0
    %1407 = vmatprep.subr.bf16.mxu0 0
    %1408 = vmatpush1.bf16.msra.mxu0 0
    %1409 = vmatprep.subr.bf16.mxu0 0
    %1410 = vmatpush1.bf16.msra.mxu0 0
    %1411 = vmatprep.subr.bf16.mxu0 0
    %1412 = vmatpush1.bf16.msra.mxu0 0
    %1413 = vmatprep.subr.bf16.mxu0 0
    %1414 = vmatpush1.bf16.msra.mxu0 0
    %1415 = vmatprep.subr.bf16.mxu0 0
    %1416 = vmatpush1.bf16.msra.mxu0 0
    %1417 = vmatprep.subr.bf16.mxu0 0
    %1418 = vmatpush1.bf16.msra.mxu0 0
    %1419 = vmatprep.subr.bf16.mxu0 0
    %1420 = vmatpush1.bf16.msra.mxu0 0
    %1421 = vmatprep.subr.bf16.mxu0 0
    %1422 = vmatpush1.bf16.msra.mxu0 0
    %1423 = vmatprep.subr.bf16.mxu0 0
    %1424 = vmatpush1.bf16.msra.mxu0 0
    %1425 = vmatprep.subr.bf16.mxu0 0
    %1426 = vmatpush1.bf16.msra.mxu0 0
    %1427 = vmatprep.subr.bf16.mxu0 0
    %1428 = vmatpush1.bf16.msra.mxu0 0
    %1429 = vmatprep.mubr.bf16.mxu0 0
    %1430 = vmatmul.mubr.bf16.gmra.mrb[0].mxu0 %v1392
    %v1431 = vpop.f32.mrb[0].mxu0
    %v1432 = vadd.f32 0.0, %v1431
    %v1433 = vpop.f32.mrb[0].mxu0
    %v1434 = vpop.f32.mrb[0].mxu0
    %v1435 = vadd.f32 0.0, %v1434
    %v1436 = vpop.f32.mrb[0].mxu0
    %1437 = vdwg.mxu0
    %v1438 = vadd.f32 %v1162, %v1432
    %v1439 = vadd.f32 %v1163, %v1435
    %v1441 = vlaneseq
    %v1442 = vshrl.u32 %v1441, 7
    %v1443 = vsub.s32 0, %v1442
    %v1444 = vrot.slane %v133, %v1443
    %v1446 = vadd.f32 %v1438, %v1444
    %v1447 = vadd.f32 %v1439, %v1444
    %1448 = vst.msk [vmem:[#allocation13] sm:$0xff] %vm153, %v1446
    %1449 = vst.msk [vmem:[#allocation13 + $0x8] sm:$0xff] %vm153, %v1447
    // Predicated region
    $region62: #{tpu_custom_call.1} parent=1 // pred_check
      _
    $region63: #{tpu_custom_call.1} parent=1 // pred_check_branch
      %1451 = sbr.rel (0) target = $region65
    $region64: #{tpu_custom_call.1} parent=1 // pred_region
      %s1453 = ssub.s32 256, 256
      %1454 = vsyncadd [#allocation4], %s1453
      %s1455 = sshll.u32 [#allocation13], 4
      %s1456 = int_to_ptr.vmem [resolvable:$true] %s1455
      %1461 = dma.vmem_to_hbm [thread:$0]  %s1456, 256, %s9, [#allocation4], 128, 128, 8
    $region65: #{tpu_custom_call.1} parent=1 // pred_fallthru
      _
    // Predicated region
    $region66: #{tpu_custom_call.1} parent=1 // pred_check
      _
    $region67: #{tpu_custom_call.1} parent=1 // pred_check_branch
      %1463 = sbr.rel (0) target = $region69
    $region68: #{tpu_custom_call.1} parent=1 // pred_region
      %1464 = dma.done [#allocation4], 256
    $region69: #{tpu_custom_call.1} parent=1 // pred_fallthru
      _
    %1465 = vsyncpa [#allocation3], 1
    %1466 = vsyncpa [#allocation6], 1
    %1467 = vsyncpa [#allocation9], 1
    %1468 = vsyncpa [#allocation12], 1
    %1469 = vsyncpa [#allocation4], 1

</llo_original>
